<compile_context>
chip_gen: v6e
topology: v6e:2x2x1
jax: 0.10.0
libtpu: 0.0.40
codegen_flags: <defaults>
</compile_context>

<pallas_src>
import numpy as np
import jax
import jax.numpy as jnp
from jax import lax
from jax.experimental import pallas as pl
from jax.experimental.pallas import tpu as pltpu

# ---- config (stands in for NETWORK_CONFIG / MDP_CONFIG at small sizes) ----
IN_CHANNELS = 4          # NETWORK_CONFIG.in_channels
HIDDEN_CHANNELS = 8      # NETWORK_CONFIG.num_channels
NUM_RES = 2              # NETWORK_CONFIG.num_res
H = W = 4
BOARD_SIZE = H * W       # Linear(board_size*4, ...) follows Flatten of (N,4,H,W)
ACTION_SIZE = 10         # MDP_CONFIG.action_size
BN_EPS = 1e-5
FEAT = H * W * HIDDEN_CHANNELS   # 128 — exactly one vreg / MXU lane tile


# --------------------------------- kernel -------------------------------------
def fused_forward_kernel(x_ref, w0_ref, sel_ref, selT_ref,
                         rw_ref, rg_ref, rb_ref,
                         wc_ref, bc_ref, w1_ref, b1_ref, w2_ref, b2_ref,
                         o_ref):
    x = x_ref[...]                      # (N, Cin*H*W) — raw NCHW flatten
    sel = sel_ref[...]                  # (FEAT, C)  lane -> channel one-hot
    selT = selT_ref[...]                # (C, FEAT)  channel -> lane broadcast
    n = x.shape[0]
    inv_count = 1.0 / (n * H * W)

    # common_layers[0:2]: circular conv3x3 (as one dense matmul) + ReLU
    f = jnp.maximum(
        jnp.dot(x, w0_ref[...], preferred_element_type=jnp.float32), 0.0)

    def batchnorm(y, g_lane, b_lane):
        # one-pass per-channel batch stats, all in the lane-dense layout
        s1 = jnp.dot(jnp.sum(y, axis=0, keepdims=True), sel,
                     preferred_element_type=jnp.float32)          # (1, C)
        s2 = jnp.dot(jnp.sum(y * y, axis=0, keepdims=True), sel,
                     preferred_element_type=jnp.float32)          # (1, C)
        mean = s1 * inv_count
        var = s2 * inv_count - mean * mean                        # biased var
        scale = lax.rsqrt(var + BN_EPS)                           # (1, C)
        # broadcast channel quantities back to the 128-lane layout
        scale_l = jnp.dot(scale, selT, preferred_element_type=jnp.float32)
        mean_l = jnp.dot(mean, selT, preferred_element_type=jnp.float32)
        a = scale_l * g_lane                                      # folded scale
        b = b_lane - mean_l * a                                   # folded bias
        return y * a + b

    # ResBlocks: conv -> BN -> ReLU -> conv -> BN, then ReLU(x + y)
    for r in range(NUM_RES):
        y = jnp.dot(f, rw_ref[2 * r], preferred_element_type=jnp.float32)
        y = jnp.maximum(batchnorm(y, rg_ref[2 * r], rb_ref[2 * r]), 0.0)
        y = jnp.dot(y, rw_ref[2 * r + 1], preferred_element_type=jnp.float32)
        y = batchnorm(y, rg_ref[2 * r + 1], rb_ref[2 * r + 1])
        f = jnp.maximum(f + y, 0.0)

    # A_output head: 1x1 conv(+bias) -> ReLU -> Flatten -> Linear -> ReLU
    #                -> Linear -> Softmax(dim=1)
    h = jnp.maximum(
        jnp.dot(f, wc_ref[...], preferred_element_type=jnp.float32) + bc_ref[...],
        0.0)                                                      # (N, 64)
    h = jnp.maximum(
        jnp.dot(h, w1_ref[...], preferred_element_type=jnp.float32) + b1_ref[...],
        0.0)                                                      # (N, 32)
    logits = (jnp.dot(h, w2_ref[...], preferred_element_type=jnp.float32)
              + b2_ref[...])                                      # (N, 10)
    m = jnp.max(logits, axis=1, keepdims=True)
    e = jnp.exp(logits - m)
    o_ref[...] = e / jnp.sum(e, axis=1, keepdims=True)


# ---------------------------- parameter baking ---------------------------------
def _conv3x3_dense(w, in_layout):
    """Bake a circular 3x3 conv into a dense matmul matrix.

    w: numpy (Cout, Cin, 3, 3) (PyTorch layout).
    in_layout: "nchw" -> rows indexed ci*H*W + hi*W + wi (raw NCHW flatten),
               "nhwc" -> rows indexed hi*W*Cin + wi*Cin + ci (lane-dense).
    Columns are always lane-dense: ho*W*Cout + wo*Cout + co.
    """
    cout, cin = int(w.shape[0]), int(w.shape[1])
    if in_layout == "nchw":
        M = np.zeros((cin, H, W, H, W, cout), np.float32)
    else:
        M = np.zeros((H, W, cin, H, W, cout), np.float32)
    for kh in range(3):
        for kw in range(3):
            wk = np.ascontiguousarray(w[:, :, kh, kw].T)          # (cin, cout)
            for ho in range(H):
                hi = (ho + kh - 1) % H
                for wo in range(W):
                    wi = (wo + kw - 1) % W
                    if in_layout == "nchw":
                        M[:, hi, wi, ho, wo, :] += wk
                    else:
                        M[hi, wi, :, ho, wo, :] += wk
    return M.reshape(H * W * cin, H * W * cout)


def _conv1x1_dense(wc):
    """wc: (Cout, Cin).  Block-diagonal dense matrix on the lane-dense layout."""
    cout, cin = wc.shape
    M = np.zeros((H * W, cin, H * W, cout), np.float32)
    for p in range(H * W):
        M[p, :, p, :] = wc.T
    return M.reshape(H * W * cin, H * W * cout)


def init_params(key):
    keys = iter(jax.random.split(key, 4 + 2 * NUM_RES))
    p = {}
    # common conv: PyTorch weight (Cout, Cin, 3, 3).  Rows of the dense matrix
    # are the raw NCHW flatten of the input -> no runtime transpose needed.
    w0 = 0.1 * np.asarray(jax.random.normal(
        next(keys), (HIDDEN_CHANNELS, IN_CHANNELS, 3, 3), jnp.float32))
    p["w0"] = jnp.asarray(_conv3x3_dense(w0, "nchw"))             # (64, 128)

    # lane <-> channel selector constants (for BN stats / broadcast)
    lanes = np.arange(FEAT)
    sel = (lanes[:, None] % HIDDEN_CHANNELS ==
           np.arange(HIDDEN_CHANNELS)[None, :]).astype(np.float32)
    p["sel"] = jnp.asarray(sel)                                   # (128, 8)
    p["selT"] = jnp.asarray(np.ascontiguousarray(sel.T))          # (8, 128)

    rw, rg, rb = [], [], []
    for _ in range(NUM_RES):
        for _c in range(2):
            w = 0.1 * np.asarray(jax.random.normal(
                next(keys), (HIDDEN_CHANNELS, HIDDEN_CHANNELS, 3, 3),
                jnp.float32))
            rw.append(_conv3x3_dense(w, "nhwc"))                  # (128, 128)
            # BN affine params replicated to the 128-lane layout (lane % C = c)
            rg.append(np.tile(np.ones(HIDDEN_CHANNELS, np.float32), H * W)[None, :])
            rb.append(np.tile(np.zeros(HIDDEN_CHANNELS, np.float32), H * W)[None, :])
    p["res_w"] = jnp.asarray(np.stack(rw))                        # (2*NUM_RES,128,128)
    p["res_g"] = jnp.asarray(np.stack(rg))                        # (2*NUM_RES,1,128)
    p["res_b"] = jnp.asarray(np.stack(rb))                        # (2*NUM_RES,1,128)

    # head: Conv2d(hidden, 4, kernel_size=1) with bias (bias init = 0)
    wc = 0.1 * np.asarray(jax.random.normal(
        next(keys), (4, HIDDEN_CHANNELS, 1, 1), jnp.float32))[:, :, 0, 0]
    bc = np.zeros(4, np.float32)
    p["wc"] = jnp.asarray(_conv1x1_dense(wc))                     # (128, 64)
    p["bc"] = jnp.asarray(np.tile(bc, H * W)[None, :])            # (1, 64)

    # Linear(board_size*4, board_size*2): PyTorch weight (out, in), `in` in
    # NCHW-flatten order (c*H*W + h*W + w).  Permute columns to the head's
    # lane-dense order (pos*4 + c) and transpose to (in, out).
    w1 = 0.1 * np.asarray(jax.random.normal(
        next(keys), (BOARD_SIZE * 2, BOARD_SIZE * 4), jnp.float32))
    pos = np.arange(H * W)
    co = np.arange(4)
    perm = (co[None, :] * (H * W) + pos[:, None]).reshape(-1)     # ours -> NCHW idx
    p["fc1_w"] = jnp.asarray(np.ascontiguousarray(w1[:, perm].T)) # (64, 32)
    p["fc1_b"] = jnp.zeros((1, BOARD_SIZE * 2), jnp.float32)

    # Linear(board_size*2, action_size)
    w2 = 0.1 * np.asarray(jax.random.normal(
        next(keys), (ACTION_SIZE, BOARD_SIZE * 2), jnp.float32))
    p["fc2_w"] = jnp.asarray(np.ascontiguousarray(w2.T))          # (32, 10)
    p["fc2_b"] = jnp.zeros((1, ACTION_SIZE), jnp.float32)
    return p


# --------------------------------- forward -------------------------------------
def _full_spec(shape):
    zeros = (0,) * len(shape)
    return pl.BlockSpec(shape, lambda: zeros)


@jax.jit
def network_forward(x_nchw, params):
    # Free reshape only — the NCHW->lane-dense permutation lives inside w0.
    x = x_nchw.astype(jnp.float32).reshape(x_nchw.shape[0], -1)   # (N, Cin*H*W)
    n = x.shape[0]
    args = (x, params["w0"], params["sel"], params["selT"],
            params["res_w"], params["res_g"], params["res_b"],
            params["wc"], params["bc"],
            params["fc1_w"], params["fc1_b"],
            params["fc2_w"], params["fc2_b"])
    out_shape = jax.ShapeDtypeStruct((n, ACTION_SIZE), jnp.float32)
    return pl.pallas_call(
        fused_forward_kernel,
        out_shape=out_shape,
        in_specs=[_full_spec(a.shape) for a in args],
        out_specs=_full_spec(out_shape.shape),
        compiler_params=pltpu.CompilerParams(vmem_limit_bytes=32 * 1024 * 1024),
    )(*args)


if __name__ == "__main__":
    key = jax.random.PRNGKey(0)
    pkey, xkey = jax.random.split(key)
    params = init_params(pkey)
    # Input in PyTorch NCHW convention: (batch=2, in_channels=4, H=4, W=4)
    x = jax.random.normal(xkey, (2, IN_CHANNELS, H, W), jnp.float32)
    out = jax.block_until_ready(network_forward(x, params))
    assert out.shape == (2, ACTION_SIZE), out.shape
    row_sums = np.asarray(jnp.sum(out, axis=1))
    assert np.allclose(row_sums, 1.0, atol=1e-4), row_sums
    print("KERNEL_OK")
</pallas_src>

<mosaic_0001>
module attributes {stable_mosaic.version = 11 : i64} {
  func.func @fused_forward_kernel(%arg0: memref<2x64xf32, #tpu.memory_space<vmem>>, %arg1: memref<64x128xf32, #tpu.memory_space<vmem>>, %arg2: memref<128x8xf32, #tpu.memory_space<vmem>>, %arg3: memref<8x128xf32, #tpu.memory_space<vmem>>, %arg4: memref<4x128x128xf32, #tpu.memory_space<vmem>>, %arg5: memref<4x1x128xf32, #tpu.memory_space<vmem>>, %arg6: memref<4x1x128xf32, #tpu.memory_space<vmem>>, %arg7: memref<128x64xf32, #tpu.memory_space<vmem>>, %arg8: memref<1x64xf32, #tpu.memory_space<vmem>>, %arg9: memref<64x32xf32, #tpu.memory_space<vmem>>, %arg10: memref<1x32xf32, #tpu.memory_space<vmem>>, %arg11: memref<32x10xf32, #tpu.memory_space<vmem>>, %arg12: memref<1x10xf32, #tpu.memory_space<vmem>>, %arg13: memref<2x10xf32, #tpu.memory_space<vmem>>) attributes {dimension_semantics = [], scalar_prefetch = 0 : i64, scratch_operands = 0 : i64, tpu.core_type = #tpu.core_type<tc>} {
    %c0 = arith.constant 0 : index
    %c0_0 = arith.constant 0 : index
    %0 = vector.load %arg0[%c0, %c0_0] : memref<2x64xf32, #tpu.memory_space<vmem>>, vector<2x64xf32>
    %c0_1 = arith.constant 0 : index
    %c0_2 = arith.constant 0 : index
    %1 = vector.load %arg2[%c0_1, %c0_2] : memref<128x8xf32, #tpu.memory_space<vmem>>, vector<128x8xf32>
    %c0_3 = arith.constant 0 : index
    %c0_4 = arith.constant 0 : index
    %2 = vector.load %arg3[%c0_3, %c0_4] : memref<8x128xf32, #tpu.memory_space<vmem>>, vector<8x128xf32>
    %c0_5 = arith.constant 0 : index
    %c0_6 = arith.constant 0 : index
    %3 = vector.load %arg1[%c0_5, %c0_6] : memref<64x128xf32, #tpu.memory_space<vmem>>, vector<64x128xf32>
    %cst = arith.constant dense<0.000000e+00> : vector<2x128xf32>
    %4 = tpu.matmul %0, %3, %cst {dimension_numbers = #tpu.dot_dimension_numbers<[1], [0], [0], [1], [0, 0, 1, 1], [], []>} : vector<2x64xf32>, vector<64x128xf32>, vector<2x128xf32> -> vector<2x128xf32>
    %cst_7 = arith.constant 0.000000e+00 : f32
    %5 = vector.broadcast %cst_7 : f32 to vector<2x128xf32>
    %6 = arith.maximumf %4, %5 : vector<2x128xf32>
    %c0_8 = arith.constant 0 : index
    %c0_9 = arith.constant 0 : index
    %c0_10 = arith.constant 0 : index
    %7 = vector.load %arg4[%c0_8, %c0_9, %c0_10] : memref<4x128x128xf32, #tpu.memory_space<vmem>>, vector<1x128x128xf32>
    %8 = vector.shape_cast %7 : vector<1x128x128xf32> to vector<128x128xf32>
    %cst_11 = arith.constant dense<0.000000e+00> : vector<2x128xf32>
    %9 = tpu.matmul %6, %8, %cst_11 {dimension_numbers = #tpu.dot_dimension_numbers<[1], [0], [0], [1], [0, 0, 1, 1], [], []>} : vector<2x128xf32>, vector<128x128xf32>, vector<2x128xf32> -> vector<2x128xf32>
    %c0_12 = arith.constant 0 : index
    %c0_13 = arith.constant 0 : index
    %c0_14 = arith.constant 0 : index
    %10 = vector.load %arg5[%c0_12, %c0_13, %c0_14] : memref<4x1x128xf32, #tpu.memory_space<vmem>>, vector<1x1x128xf32>
    %11 = vector.shape_cast %10 : vector<1x1x128xf32> to vector<1x128xf32>
    %c0_15 = arith.constant 0 : index
    %c0_16 = arith.constant 0 : index
    %c0_17 = arith.constant 0 : index
    %12 = vector.load %arg6[%c0_15, %c0_16, %c0_17] : memref<4x1x128xf32, #tpu.memory_space<vmem>>, vector<1x1x128xf32>
    %13 = vector.shape_cast %12 : vector<1x1x128xf32> to vector<1x128xf32>
    %cst_18 = arith.constant dense<0.000000e+00> : vector<128xf32>
    %14 = vector.multi_reduction <add>, %9, %cst_18 [0] : vector<2x128xf32> to vector<128xf32>
    %15 = vector.shape_cast %14 : vector<128xf32> to vector<1x128xf32>
    %cst_19 = arith.constant dense<0.000000e+00> : vector<1x8xf32>
    %16 = tpu.matmul %15, %1, %cst_19 {dimension_numbers = #tpu.dot_dimension_numbers<[1], [0], [0], [1], [0, 0, 1, 1], [], []>} : vector<1x128xf32>, vector<128x8xf32>, vector<1x8xf32> -> vector<1x8xf32>
    %17 = arith.mulf %9, %9 : vector<2x128xf32>
    %cst_20 = arith.constant dense<0.000000e+00> : vector<128xf32>
    %18 = vector.multi_reduction <add>, %17, %cst_20 [0] : vector<2x128xf32> to vector<128xf32>
    %19 = vector.shape_cast %18 : vector<128xf32> to vector<1x128xf32>
    %cst_21 = arith.constant dense<0.000000e+00> : vector<1x8xf32>
    %20 = tpu.matmul %19, %1, %cst_21 {dimension_numbers = #tpu.dot_dimension_numbers<[1], [0], [0], [1], [0, 0, 1, 1], [], []>} : vector<1x128xf32>, vector<128x8xf32>, vector<1x8xf32> -> vector<1x8xf32>
    %cst_22 = arith.constant 3.125000e-02 : f32
    %21 = vector.broadcast %cst_22 : f32 to vector<1x8xf32>
    %22 = arith.mulf %16, %21 : vector<1x8xf32>
    %cst_23 = arith.constant 3.125000e-02 : f32
    %23 = vector.broadcast %cst_23 : f32 to vector<1x8xf32>
    %24 = arith.mulf %20, %23 : vector<1x8xf32>
    %25 = arith.mulf %22, %22 : vector<1x8xf32>
    %26 = arith.subf %24, %25 : vector<1x8xf32>
    %cst_24 = arith.constant 9.99999974E-6 : f32
    %27 = vector.broadcast %cst_24 : f32 to vector<1x8xf32>
    %28 = arith.addf %26, %27 : vector<1x8xf32>
    %29 = math.rsqrt %28 : vector<1x8xf32>
    %cst_25 = arith.constant dense<0.000000e+00> : vector<1x128xf32>
    %30 = tpu.matmul %29, %2, %cst_25 {dimension_numbers = #tpu.dot_dimension_numbers<[1], [0], [0], [1], [0, 0, 1, 1], [], []>} : vector<1x8xf32>, vector<8x128xf32>, vector<1x128xf32> -> vector<1x128xf32>
    %cst_26 = arith.constant dense<0.000000e+00> : vector<1x128xf32>
    %31 = tpu.matmul %22, %2, %cst_26 {dimension_numbers = #tpu.dot_dimension_numbers<[1], [0], [0], [1], [0, 0, 1, 1], [], []>} : vector<1x8xf32>, vector<8x128xf32>, vector<1x128xf32> -> vector<1x128xf32>
    %32 = arith.mulf %30, %11 : vector<1x128xf32>
    %33 = arith.mulf %31, %32 : vector<1x128xf32>
    %34 = arith.subf %13, %33 : vector<1x128xf32>
    %35 = vector.broadcast %32 : vector<1x128xf32> to vector<2x128xf32>
    %36 = arith.mulf %9, %35 : vector<2x128xf32>
    %37 = vector.broadcast %34 : vector<1x128xf32> to vector<2x128xf32>
    %38 = arith.addf %36, %37 : vector<2x128xf32>
    %cst_27 = arith.constant 0.000000e+00 : f32
    %39 = vector.broadcast %cst_27 : f32 to vector<2x128xf32>
    %40 = arith.maximumf %38, %39 : vector<2x128xf32>
    %c1 = arith.constant 1 : index
    %c0_28 = arith.constant 0 : index
    %c0_29 = arith.constant 0 : index
    %41 = vector.load %arg4[%c1, %c0_28, %c0_29] : memref<4x128x128xf32, #tpu.memory_space<vmem>>, vector<1x128x128xf32>
    %42 = vector.shape_cast %41 : vector<1x128x128xf32> to vector<128x128xf32>
    %cst_30 = arith.constant dense<0.000000e+00> : vector<2x128xf32>
    %43 = tpu.matmul %40, %42, %cst_30 {dimension_numbers = #tpu.dot_dimension_numbers<[1], [0], [0], [1], [0, 0, 1, 1], [], []>} : vector<2x128xf32>, vector<128x128xf32>, vector<2x128xf32> -> vector<2x128xf32>
    %c1_31 = arith.constant 1 : index
    %c0_32 = arith.constant 0 : index
    %c0_33 = arith.constant 0 : index
    %44 = vector.load %arg5[%c1_31, %c0_32, %c0_33] : memref<4x1x128xf32, #tpu.memory_space<vmem>>, vector<1x1x128xf32>
    %45 = vector.shape_cast %44 : vector<1x1x128xf32> to vector<1x128xf32>
    %c1_34 = arith.constant 1 : index
    %c0_35 = arith.constant 0 : index
    %c0_36 = arith.constant 0 : index
    %46 = vector.load %arg6[%c1_34, %c0_35, %c0_36] : memref<4x1x128xf32, #tpu.memory_space<vmem>>, vector<1x1x128xf32>
    %47 = vector.shape_cast %46 : vector<1x1x128xf32> to vector<1x128xf32>
    %cst_37 = arith.constant dense<0.000000e+00> : vector<128xf32>
    %48 = vector.multi_reduction <add>, %43, %cst_37 [0] : vector<2x128xf32> to vector<128xf32>
    %49 = vector.shape_cast %48 : vector<128xf32> to vector<1x128xf32>
    %cst_38 = arith.constant dense<0.000000e+00> : vector<1x8xf32>
    %50 = tpu.matmul %49, %1, %cst_38 {dimension_numbers = #tpu.dot_dimension_numbers<[1], [0], [0], [1], [0, 0, 1, 1], [], []>} : vector<1x128xf32>, vector<128x8xf32>, vector<1x8xf32> -> vector<1x8xf32>
    %51 = arith.mulf %43, %43 : vector<2x128xf32>
    %cst_39 = arith.constant dense<0.000000e+00> : vector<128xf32>
    %52 = vector.multi_reduction <add>, %51, %cst_39 [0] : vector<2x128xf32> to vector<128xf32>
    %53 = vector.shape_cast %52 : vector<128xf32> to vector<1x128xf32>
    %cst_40 = arith.constant dense<0.000000e+00> : vector<1x8xf32>
    %54 = tpu.matmul %53, %1, %cst_40 {dimension_numbers = #tpu.dot_dimension_numbers<[1], [0], [0], [1], [0, 0, 1, 1], [], []>} : vector<1x128xf32>, vector<128x8xf32>, vector<1x8xf32> -> vector<1x8xf32>
    %cst_41 = arith.constant 3.125000e-02 : f32
    %55 = vector.broadcast %cst_41 : f32 to vector<1x8xf32>
    %56 = arith.mulf %50, %55 : vector<1x8xf32>
    %cst_42 = arith.constant 3.125000e-02 : f32
    %57 = vector.broadcast %cst_42 : f32 to vector<1x8xf32>
    %58 = arith.mulf %54, %57 : vector<1x8xf32>
    %59 = arith.mulf %56, %56 : vector<1x8xf32>
    %60 = arith.subf %58, %59 : vector<1x8xf32>
    %cst_43 = arith.constant 9.99999974E-6 : f32
    %61 = vector.broadcast %cst_43 : f32 to vector<1x8xf32>
    %62 = arith.addf %60, %61 : vector<1x8xf32>
    %63 = math.rsqrt %62 : vector<1x8xf32>
    %cst_44 = arith.constant dense<0.000000e+00> : vector<1x128xf32>
    %64 = tpu.matmul %63, %2, %cst_44 {dimension_numbers = #tpu.dot_dimension_numbers<[1], [0], [0], [1], [0, 0, 1, 1], [], []>} : vector<1x8xf32>, vector<8x128xf32>, vector<1x128xf32> -> vector<1x128xf32>
    %cst_45 = arith.constant dense<0.000000e+00> : vector<1x128xf32>
    %65 = tpu.matmul %56, %2, %cst_45 {dimension_numbers = #tpu.dot_dimension_numbers<[1], [0], [0], [1], [0, 0, 1, 1], [], []>} : vector<1x8xf32>, vector<8x128xf32>, vector<1x128xf32> -> vector<1x128xf32>
    %66 = arith.mulf %64, %45 : vector<1x128xf32>
    %67 = arith.mulf %65, %66 : vector<1x128xf32>
    %68 = arith.subf %47, %67 : vector<1x128xf32>
    %69 = vector.broadcast %66 : vector<1x128xf32> to vector<2x128xf32>
    %70 = arith.mulf %43, %69 : vector<2x128xf32>
    %71 = vector.broadcast %68 : vector<1x128xf32> to vector<2x128xf32>
    %72 = arith.addf %70, %71 : vector<2x128xf32>
    %73 = arith.addf %6, %72 : vector<2x128xf32>
    %cst_46 = arith.constant 0.000000e+00 : f32
    %74 = vector.broadcast %cst_46 : f32 to vector<2x128xf32>
    %75 = arith.maximumf %73, %74 : vector<2x128xf32>
    %c2 = arith.constant 2 : index
    %c0_47 = arith.constant 0 : index
    %c0_48 = arith.constant 0 : index
    %76 = vector.load %arg4[%c2, %c0_47, %c0_48] : memref<4x128x128xf32, #tpu.memory_space<vmem>>, vector<1x128x128xf32>
    %77 = vector.shape_cast %76 : vector<1x128x128xf32> to vector<128x128xf32>
    %cst_49 = arith.constant dense<0.000000e+00> : vector<2x128xf32>
    %78 = tpu.matmul %75, %77, %cst_49 {dimension_numbers = #tpu.dot_dimension_numbers<[1], [0], [0], [1], [0, 0, 1, 1], [], []>} : vector<2x128xf32>, vector<128x128xf32>, vector<2x128xf32> -> vector<2x128xf32>
    %c2_50 = arith.constant 2 : index
    %c0_51 = arith.constant 0 : index
    %c0_52 = arith.constant 0 : index
    %79 = vector.load %arg5[%c2_50, %c0_51, %c0_52] : memref<4x1x128xf32, #tpu.memory_space<vmem>>, vector<1x1x128xf32>
    %80 = vector.shape_cast %79 : vector<1x1x128xf32> to vector<1x128xf32>
    %c2_53 = arith.constant 2 : index
    %c0_54 = arith.constant 0 : index
    %c0_55 = arith.constant 0 : index
    %81 = vector.load %arg6[%c2_53, %c0_54, %c0_55] : memref<4x1x128xf32, #tpu.memory_space<vmem>>, vector<1x1x128xf32>
    %82 = vector.shape_cast %81 : vector<1x1x128xf32> to vector<1x128xf32>
    %cst_56 = arith.constant dense<0.000000e+00> : vector<128xf32>
    %83 = vector.multi_reduction <add>, %78, %cst_56 [0] : vector<2x128xf32> to vector<128xf32>
    %84 = vector.shape_cast %83 : vector<128xf32> to vector<1x128xf32>
    %cst_57 = arith.constant dense<0.000000e+00> : vector<1x8xf32>
    %85 = tpu.matmul %84, %1, %cst_57 {dimension_numbers = #tpu.dot_dimension_numbers<[1], [0], [0], [1], [0, 0, 1, 1], [], []>} : vector<1x128xf32>, vector<128x8xf32>, vector<1x8xf32> -> vector<1x8xf32>
    %86 = arith.mulf %78, %78 : vector<2x128xf32>
    %cst_58 = arith.constant dense<0.000000e+00> : vector<128xf32>
    %87 = vector.multi_reduction <add>, %86, %cst_58 [0] : vector<2x128xf32> to vector<128xf32>
    %88 = vector.shape_cast %87 : vector<128xf32> to vector<1x128xf32>
    %cst_59 = arith.constant dense<0.000000e+00> : vector<1x8xf32>
    %89 = tpu.matmul %88, %1, %cst_59 {dimension_numbers = #tpu.dot_dimension_numbers<[1], [0], [0], [1], [0, 0, 1, 1], [], []>} : vector<1x128xf32>, vector<128x8xf32>, vector<1x8xf32> -> vector<1x8xf32>
    %cst_60 = arith.constant 3.125000e-02 : f32
    %90 = vector.broadcast %cst_60 : f32 to vector<1x8xf32>
    %91 = arith.mulf %85, %90 : vector<1x8xf32>
    %cst_61 = arith.constant 3.125000e-02 : f32
    %92 = vector.broadcast %cst_61 : f32 to vector<1x8xf32>
    %93 = arith.mulf %89, %92 : vector<1x8xf32>
    %94 = arith.mulf %91, %91 : vector<1x8xf32>
    %95 = arith.subf %93, %94 : vector<1x8xf32>
    %cst_62 = arith.constant 9.99999974E-6 : f32
    %96 = vector.broadcast %cst_62 : f32 to vector<1x8xf32>
    %97 = arith.addf %95, %96 : vector<1x8xf32>
    %98 = math.rsqrt %97 : vector<1x8xf32>
    %cst_63 = arith.constant dense<0.000000e+00> : vector<1x128xf32>
    %99 = tpu.matmul %98, %2, %cst_63 {dimension_numbers = #tpu.dot_dimension_numbers<[1], [0], [0], [1], [0, 0, 1, 1], [], []>} : vector<1x8xf32>, vector<8x128xf32>, vector<1x128xf32> -> vector<1x128xf32>
    %cst_64 = arith.constant dense<0.000000e+00> : vector<1x128xf32>
    %100 = tpu.matmul %91, %2, %cst_64 {dimension_numbers = #tpu.dot_dimension_numbers<[1], [0], [0], [1], [0, 0, 1, 1], [], []>} : vector<1x8xf32>, vector<8x128xf32>, vector<1x128xf32> -> vector<1x128xf32>
    %101 = arith.mulf %99, %80 : vector<1x128xf32>
    %102 = arith.mulf %100, %101 : vector<1x128xf32>
    %103 = arith.subf %82, %102 : vector<1x128xf32>
    %104 = vector.broadcast %101 : vector<1x128xf32> to vector<2x128xf32>
    %105 = arith.mulf %78, %104 : vector<2x128xf32>
    %106 = vector.broadcast %103 : vector<1x128xf32> to vector<2x128xf32>
    %107 = arith.addf %105, %106 : vector<2x128xf32>
    %cst_65 = arith.constant 0.000000e+00 : f32
    %108 = vector.broadcast %cst_65 : f32 to vector<2x128xf32>
    %109 = arith.maximumf %107, %108 : vector<2x128xf32>
    %c3 = arith.constant 3 : index
    %c0_66 = arith.constant 0 : index
    %c0_67 = arith.constant 0 : index
    %110 = vector.load %arg4[%c3, %c0_66, %c0_67] : memref<4x128x128xf32, #tpu.memory_space<vmem>>, vector<1x128x128xf32>
    %111 = vector.shape_cast %110 : vector<1x128x128xf32> to vector<128x128xf32>
    %cst_68 = arith.constant dense<0.000000e+00> : vector<2x128xf32>
    %112 = tpu.matmul %109, %111, %cst_68 {dimension_numbers = #tpu.dot_dimension_numbers<[1], [0], [0], [1], [0, 0, 1, 1], [], []>} : vector<2x128xf32>, vector<128x128xf32>, vector<2x128xf32> -> vector<2x128xf32>
    %c3_69 = arith.constant 3 : index
    %c0_70 = arith.constant 0 : index
    %c0_71 = arith.constant 0 : index
    %113 = vector.load %arg5[%c3_69, %c0_70, %c0_71] : memref<4x1x128xf32, #tpu.memory_space<vmem>>, vector<1x1x128xf32>
    %114 = vector.shape_cast %113 : vector<1x1x128xf32> to vector<1x128xf32>
    %c3_72 = arith.constant 3 : index
    %c0_73 = arith.constant 0 : index
    %c0_74 = arith.constant 0 : index
    %115 = vector.load %arg6[%c3_72, %c0_73, %c0_74] : memref<4x1x128xf32, #tpu.memory_space<vmem>>, vector<1x1x128xf32>
    %116 = vector.shape_cast %115 : vector<1x1x128xf32> to vector<1x128xf32>
    %cst_75 = arith.constant dense<0.000000e+00> : vector<128xf32>
    %117 = vector.multi_reduction <add>, %112, %cst_75 [0] : vector<2x128xf32> to vector<128xf32>
    %118 = vector.shape_cast %117 : vector<128xf32> to vector<1x128xf32>
    %cst_76 = arith.constant dense<0.000000e+00> : vector<1x8xf32>
    %119 = tpu.matmul %118, %1, %cst_76 {dimension_numbers = #tpu.dot_dimension_numbers<[1], [0], [0], [1], [0, 0, 1, 1], [], []>} : vector<1x128xf32>, vector<128x8xf32>, vector<1x8xf32> -> vector<1x8xf32>
    %120 = arith.mulf %112, %112 : vector<2x128xf32>
    %cst_77 = arith.constant dense<0.000000e+00> : vector<128xf32>
    %121 = vector.multi_reduction <add>, %120, %cst_77 [0] : vector<2x128xf32> to vector<128xf32>
    %122 = vector.shape_cast %121 : vector<128xf32> to vector<1x128xf32>
    %cst_78 = arith.constant dense<0.000000e+00> : vector<1x8xf32>
    %123 = tpu.matmul %122, %1, %cst_78 {dimension_numbers = #tpu.dot_dimension_numbers<[1], [0], [0], [1], [0, 0, 1, 1], [], []>} : vector<1x128xf32>, vector<128x8xf32>, vector<1x8xf32> -> vector<1x8xf32>
    %cst_79 = arith.constant 3.125000e-02 : f32
    %124 = vector.broadcast %cst_79 : f32 to vector<1x8xf32>
    %125 = arith.mulf %119, %124 : vector<1x8xf32>
    %cst_80 = arith.constant 3.125000e-02 : f32
    %126 = vector.broadcast %cst_80 : f32 to vector<1x8xf32>
    %127 = arith.mulf %123, %126 : vector<1x8xf32>
    %128 = arith.mulf %125, %125 : vector<1x8xf32>
    %129 = arith.subf %127, %128 : vector<1x8xf32>
    %cst_81 = arith.constant 9.99999974E-6 : f32
    %130 = vector.broadcast %cst_81 : f32 to vector<1x8xf32>
    %131 = arith.addf %129, %130 : vector<1x8xf32>
    %132 = math.rsqrt %131 : vector<1x8xf32>
    %cst_82 = arith.constant dense<0.000000e+00> : vector<1x128xf32>
    %133 = tpu.matmul %132, %2, %cst_82 {dimension_numbers = #tpu.dot_dimension_numbers<[1], [0], [0], [1], [0, 0, 1, 1], [], []>} : vector<1x8xf32>, vector<8x128xf32>, vector<1x128xf32> -> vector<1x128xf32>
    %cst_83 = arith.constant dense<0.000000e+00> : vector<1x128xf32>
    %134 = tpu.matmul %125, %2, %cst_83 {dimension_numbers = #tpu.dot_dimension_numbers<[1], [0], [0], [1], [0, 0, 1, 1], [], []>} : vector<1x8xf32>, vector<8x128xf32>, vector<1x128xf32> -> vector<1x128xf32>
    %135 = arith.mulf %133, %114 : vector<1x128xf32>
    %136 = arith.mulf %134, %135 : vector<1x128xf32>
    %137 = arith.subf %116, %136 : vector<1x128xf32>
    %138 = vector.broadcast %135 : vector<1x128xf32> to vector<2x128xf32>
    %139 = arith.mulf %112, %138 : vector<2x128xf32>
    %140 = vector.broadcast %137 : vector<1x128xf32> to vector<2x128xf32>
    %141 = arith.addf %139, %140 : vector<2x128xf32>
    %142 = arith.addf %75, %141 : vector<2x128xf32>
    %cst_84 = arith.constant 0.000000e+00 : f32
    %143 = vector.broadcast %cst_84 : f32 to vector<2x128xf32>
    %144 = arith.maximumf %142, %143 : vector<2x128xf32>
    %c0_85 = arith.constant 0 : index
    %c0_86 = arith.constant 0 : index
    %145 = vector.load %arg7[%c0_85, %c0_86] : memref<128x64xf32, #tpu.memory_space<vmem>>, vector<128x64xf32>
    %cst_87 = arith.constant dense<0.000000e+00> : vector<2x64xf32>
    %146 = tpu.matmul %144, %145, %cst_87 {dimension_numbers = #tpu.dot_dimension_numbers<[1], [0], [0], [1], [0, 0, 1, 1], [], []>} : vector<2x128xf32>, vector<128x64xf32>, vector<2x64xf32> -> vector<2x64xf32>
    %c0_88 = arith.constant 0 : index
    %c0_89 = arith.constant 0 : index
    %147 = vector.load %arg8[%c0_88, %c0_89] : memref<1x64xf32, #tpu.memory_space<vmem>>, vector<1x64xf32>
    %148 = vector.broadcast %147 : vector<1x64xf32> to vector<2x64xf32>
    %149 = arith.addf %146, %148 : vector<2x64xf32>
    %cst_90 = arith.constant 0.000000e+00 : f32
    %150 = vector.broadcast %cst_90 : f32 to vector<2x64xf32>
    %151 = arith.maximumf %149, %150 : vector<2x64xf32>
    %c0_91 = arith.constant 0 : index
    %c0_92 = arith.constant 0 : index
    %152 = vector.load %arg9[%c0_91, %c0_92] : memref<64x32xf32, #tpu.memory_space<vmem>>, vector<64x32xf32>
    %cst_93 = arith.constant dense<0.000000e+00> : vector<2x32xf32>
    %153 = tpu.matmul %151, %152, %cst_93 {dimension_numbers = #tpu.dot_dimension_numbers<[1], [0], [0], [1], [0, 0, 1, 1], [], []>} : vector<2x64xf32>, vector<64x32xf32>, vector<2x32xf32> -> vector<2x32xf32>
    %c0_94 = arith.constant 0 : index
    %c0_95 = arith.constant 0 : index
    %154 = vector.load %arg10[%c0_94, %c0_95] : memref<1x32xf32, #tpu.memory_space<vmem>>, vector<1x32xf32>
    %155 = vector.broadcast %154 : vector<1x32xf32> to vector<2x32xf32>
    %156 = arith.addf %153, %155 : vector<2x32xf32>
    %cst_96 = arith.constant 0.000000e+00 : f32
    %157 = vector.broadcast %cst_96 : f32 to vector<2x32xf32>
    %158 = arith.maximumf %156, %157 : vector<2x32xf32>
    %c0_97 = arith.constant 0 : index
    %c0_98 = arith.constant 0 : index
    %159 = vector.load %arg11[%c0_97, %c0_98] : memref<32x10xf32, #tpu.memory_space<vmem>>, vector<32x10xf32>
    %cst_99 = arith.constant dense<0.000000e+00> : vector<2x10xf32>
    %160 = tpu.matmul %158, %159, %cst_99 {dimension_numbers = #tpu.dot_dimension_numbers<[1], [0], [0], [1], [0, 0, 1, 1], [], []>} : vector<2x32xf32>, vector<32x10xf32>, vector<2x10xf32> -> vector<2x10xf32>
    %c0_100 = arith.constant 0 : index
    %c0_101 = arith.constant 0 : index
    %161 = vector.load %arg12[%c0_100, %c0_101] : memref<1x10xf32, #tpu.memory_space<vmem>>, vector<1x10xf32>
    %162 = vector.broadcast %161 : vector<1x10xf32> to vector<2x10xf32>
    %163 = arith.addf %160, %162 : vector<2x10xf32>
    %cst_102 = arith.constant dense<0xFF800000> : vector<2xf32>
    %164 = vector.multi_reduction <maximumf>, %163, %cst_102 [1] : vector<2x10xf32> to vector<2xf32>
    %165 = vector.shape_cast %164 : vector<2xf32> to vector<2x1xf32>
    %166 = vector.broadcast %165 : vector<2x1xf32> to vector<2x10xf32>
    %167 = arith.subf %163, %166 : vector<2x10xf32>
    %168 = math.exp %167 : vector<2x10xf32>
    %cst_103 = arith.constant dense<0.000000e+00> : vector<2xf32>
    %169 = vector.multi_reduction <add>, %168, %cst_103 [1] : vector<2x10xf32> to vector<2xf32>
    %170 = vector.shape_cast %169 : vector<2xf32> to vector<2x1xf32>
    %171 = vector.broadcast %170 : vector<2x1xf32> to vector<2x10xf32>
    %172 = arith.divf %168, %171 : vector<2x10xf32>
    %c0_104 = arith.constant 0 : index
    %c0_105 = arith.constant 0 : index
    %173 = vector.load %arg13[%c0_104, %c0_105] : memref<2x10xf32, #tpu.memory_space<vmem>>, vector<2x10xf32>
    tpu.vector_store %arg13[%c0_104, %c0_105], %172 {strides = array<i32>} : memref<2x10xf32, #tpu.memory_space<vmem>>, vector<2x10xf32>,
    return
  }
}

</mosaic_0001>

<llo_original>
// kernel: network_forward.1
$region0: #{network_forward.1}
  #allocation0 [shape = 'u32[]', space=smem, size = 0x4, offset = 0x4, fixed_abs, tag = 'smem constant byte address 0x4 - core index']
  #allocation1 [shape = 'u32[144,128]{1,0:T(1,128)}', space=vmem, size = 0x12000, scoped, tag = 'internal scratch']
  %s0 = inlined_call_operand.vmem [shape: f32[2,64], index: 0, kind: input, shape index: {}]
  %s1 = inlined_call_operand.hbm [shape: f32[64,128], index: 1, kind: input, shape index: {}]
  %s2 = inlined_call_operand.vmem [shape: f32[128,8], index: 2, kind: input, shape index: {}]
  %s3 = inlined_call_operand.vmem [shape: f32[8,128], index: 3, kind: input, shape index: {}]
  %s4 = inlined_call_operand.vmem [shape: f32[4,128,128], index: 4, kind: input, shape index: {}]
  %s5 = inlined_call_operand.hbm [shape: f32[4,1,128], index: 5, kind: input, shape index: {}]
  %s6 = inlined_call_operand.hbm [shape: f32[4,1,128], index: 6, kind: input, shape index: {}]
  %s7 = inlined_call_operand.vmem [shape: f32[128,64], index: 7, kind: input, shape index: {}]
  %s8 = inlined_call_operand.hbm [shape: f32[1,64], index: 8, kind: input, shape index: {}]
  %s9 = inlined_call_operand.vmem [shape: f32[64,32], index: 9, kind: input, shape index: {}]
  %s10 = inlined_call_operand.hbm [shape: f32[1,32], index: 10, kind: input, shape index: {}]
  %s11 = inlined_call_operand.vmem [shape: f32[32,10], index: 11, kind: input, shape index: {}]
  %s12 = inlined_call_operand.hbm [shape: f32[1,10], index: 12, kind: input, shape index: {}]
  %s13 = inlined_call_operand.hbm [shape: f32[2,10], index: 13, kind: output, shape index: {}]
  %s14 = sld [smem:[#allocation0]]
  $region86: #{network_forward.1} parent=0
    _
  %s16 = ssub.s32 1, %s14
  %s17 = scalar_select 0, %s16, %s14
  $region1: #{network_forward.1} parent=0
    #allocation2 [shape = 'u8[32768]{0}', space=vmem, size = 0x8000, scoped, tag = 'input window, operand 1, single buffered']
    #allocation3 [shape = 's32[1]{0}', space=sflag, size = 0x4, scoped, tag = 'scoped memory for network_forward.1']
    #allocation4 [shape = 's32[1]{0}', space=sflag, size = 0x4, scoped, tag = 'scoped memory for network_forward.1']
    #allocation5 [shape = 'u8[2048]{0}', space=vmem, size = 0x800, scoped, tag = 'input window, operand 5, single buffered']
    #allocation6 [shape = 's32[1]{0}', space=sflag, size = 0x4, scoped, tag = 'scoped memory for network_forward.1']
    #allocation7 [shape = 'u8[2048]{0}', space=vmem, size = 0x800, scoped, tag = 'input window, operand 6, single buffered']
    #allocation8 [shape = 'u8[512]{0}', space=vmem, size = 0x400, scoped, tag = 'input window, operand 8, single buffered']
    #allocation9 [shape = 's32[1]{0}', space=sflag, size = 0x4, scoped, tag = 'scoped memory for network_forward.1']
    #allocation10 [shape = 'u8[512]{0}', space=vmem, size = 0x400, scoped, tag = 'input window, operand 10, single buffered']
    #allocation11 [shape = 'u8[512]{0}', space=vmem, size = 0x400, scoped, tag = 'input window, operand 12, single buffered']
    #allocation12 [shape = 's32[1]{0}', space=sflag, size = 0x4, scoped, tag = 'scoped memory for network_forward.1']
    #allocation13 [shape = 'u8[1024]{0}', space=vmem, size = 0x400, scoped, tag = 'output window, operand 0, single buffered']
    %18 = vsyncpa [#allocation3], 0
    %19 = vsyncpa [#allocation6], 0
    %20 = vsyncpa [#allocation9], 0
    %21 = vsyncpa [#allocation12], 0
    %22 = vsyncpa [#allocation4], 0
    // Predicated region
    $region2: #{network_forward.1} parent=1 // pred_check
      _
    $region3: #{network_forward.1} parent=1 // pred_check_branch
      %24 = sbr.rel (0) target = $region5
    $region4: #{network_forward.1} parent=1 // pred_region
      _
    $region5: #{network_forward.1} parent=1 // pred_fallthru
      _
    // Predicated region
    $region6: #{network_forward.1} parent=1 // pred_check
      _
    $region7: #{network_forward.1} parent=1 // pred_check_branch
      %26 = sbr.rel (0) target = $region9
    $region8: #{network_forward.1} parent=1 // pred_region
      %s28 = ssub.s32 1024, 1024
      %29 = vsyncadd [#allocation3], %s28
      %s30 = sshll.u32 [#allocation2], 4
      %s31 = int_to_ptr.vmem [resolvable:$true] %s30
      %36 = dma.hbm_to_vmem [thread:$0]  %s1, 1024, %s31, [#allocation3], 128, 128, 8
    $region9: #{network_forward.1} parent=1 // pred_fallthru
      _
    // Predicated region
    $region10: #{network_forward.1} parent=1 // pred_check
      _
    $region11: #{network_forward.1} parent=1 // pred_check_branch
      %38 = sbr.rel (0) target = $region13
    $region12: #{network_forward.1} parent=1 // pred_region
      _
    $region13: #{network_forward.1} parent=1 // pred_fallthru
      _
    // Predicated region
    $region14: #{network_forward.1} parent=1 // pred_check
      _
    $region15: #{network_forward.1} parent=1 // pred_check_branch
      %40 = sbr.rel (0) target = $region17
    $region16: #{network_forward.1} parent=1 // pred_region
      _
    $region17: #{network_forward.1} parent=1 // pred_fallthru
      _
    // Predicated region
    $region18: #{network_forward.1} parent=1 // pred_check
      _
    $region19: #{network_forward.1} parent=1 // pred_check_branch
      %42 = sbr.rel (0) target = $region21
    $region20: #{network_forward.1} parent=1 // pred_region
      _
    $region21: #{network_forward.1} parent=1 // pred_fallthru
      _
    // Predicated region
    $region22: #{network_forward.1} parent=1 // pred_check
      _
    $region23: #{network_forward.1} parent=1 // pred_check_branch
      %44 = sbr.rel (0) target = $region25
    $region24: #{network_forward.1} parent=1 // pred_region
      %s46 = ssub.s32 64, 64
      %47 = vsyncadd [#allocation6], %s46
      %s48 = sshll.u32 [#allocation5], 4
      %s49 = int_to_ptr.vmem [resolvable:$true] %s48
      %54 = dma.hbm_to_vmem [thread:$0]  %s5, 64, %s49, [#allocation6], 16, 16, 1
    $region25: #{network_forward.1} parent=1 // pred_fallthru
      _
    // Predicated region
    $region26: #{network_forward.1} parent=1 // pred_check
      _
    $region27: #{network_forward.1} parent=1 // pred_check_branch
      %56 = sbr.rel (0) target = $region29
    $region28: #{network_forward.1} parent=1 // pred_region
      %s58 = ssub.s32 64, 64
      %59 = vsyncadd [#allocation6], %s58
      %s60 = sshll.u32 [#allocation7], 4
      %s61 = int_to_ptr.vmem [resolvable:$true] %s60
      %66 = dma.hbm_to_vmem [thread:$0]  %s6, 64, %s61, [#allocation6], 16, 16, 1
    $region29: #{network_forward.1} parent=1 // pred_fallthru
      _
    // Predicated region
    $region30: #{network_forward.1} parent=1 // pred_check
      _
    $region31: #{network_forward.1} parent=1 // pred_check_branch
      %68 = sbr.rel (0) target = $region33
    $region32: #{network_forward.1} parent=1 // pred_region
      _
    $region33: #{network_forward.1} parent=1 // pred_fallthru
      _
    // Predicated region
    $region34: #{network_forward.1} parent=1 // pred_check
      _
    $region35: #{network_forward.1} parent=1 // pred_check_branch
      %70 = sbr.rel (0) target = $region37
    $region36: #{network_forward.1} parent=1 // pred_region
      %s72 = ssub.s32 16, 16
      %73 = vsyncadd [#allocation9], %s72
      %s75 = sshll.u32 [#allocation8], 4
      %s76 = int_to_ptr.vmem [resolvable:$true] %s75
      %78 = dma.hbm_to_vmem [thread:$0]  %s8, 16, %s76, [#allocation9]
    $region37: #{network_forward.1} parent=1 // pred_fallthru
      _
    // Predicated region
    $region38: #{network_forward.1} parent=1 // pred_check
      _
    $region39: #{network_forward.1} parent=1 // pred_check_branch
      %80 = sbr.rel (0) target = $region41
    $region40: #{network_forward.1} parent=1 // pred_region
      _
    $region41: #{network_forward.1} parent=1 // pred_fallthru
      _
    // Predicated region
    $region42: #{network_forward.1} parent=1 // pred_check
      _
    $region43: #{network_forward.1} parent=1 // pred_check_branch
      %82 = sbr.rel (0) target = $region45
    $region44: #{network_forward.1} parent=1 // pred_region
      %s84 = ssub.s32 16, 16
      %85 = vsyncadd [#allocation9], %s84
      %s87 = sshll.u32 [#allocation10], 4
      %s88 = int_to_ptr.vmem [resolvable:$true] %s87
      %90 = dma.hbm_to_vmem [thread:$0]  %s10, 16, %s88, [#allocation9]
    $region45: #{network_forward.1} parent=1 // pred_fallthru
      _
    // Predicated region
    $region46: #{network_forward.1} parent=1 // pred_check
      _
    $region47: #{network_forward.1} parent=1 // pred_check_branch
      %92 = sbr.rel (0) target = $region49
    $region48: #{network_forward.1} parent=1 // pred_region
      _
    $region49: #{network_forward.1} parent=1 // pred_fallthru
      _
    // Predicated region
    $region50: #{network_forward.1} parent=1 // pred_check
      _
    $region51: #{network_forward.1} parent=1 // pred_check_branch
      %94 = sbr.rel (0) target = $region53
    $region52: #{network_forward.1} parent=1 // pred_region
      %s96 = ssub.s32 16, 16
      %97 = vsyncadd [#allocation12], %s96
      %s99 = sshll.u32 [#allocation11], 4
      %s100 = int_to_ptr.vmem [resolvable:$true] %s99
      %102 = dma.hbm_to_vmem [thread:$0]  %s12, 16, %s100, [#allocation12]
    $region53: #{network_forward.1} parent=1 // pred_fallthru
      _
    // Predicated region
    $region54: #{network_forward.1} parent=1 // pred_check
      _
    $region55: #{network_forward.1} parent=1 // pred_check_branch
      %104 = sbr.rel (0) target = $region57
    $region56: #{network_forward.1} parent=1 // pred_region
      %105 = dma.done [#allocation3], 1024
    $region57: #{network_forward.1} parent=1 // pred_fallthru
      _
    // Predicated region
    $region58: #{network_forward.1} parent=1 // pred_check
      _
    $region59: #{network_forward.1} parent=1 // pred_check_branch
      %107 = sbr.rel (0) target = $region61
    $region60: #{network_forward.1} parent=1 // pred_region
      %108 = dma.done [#allocation6], 64
    $region61: #{network_forward.1} parent=1 // pred_fallthru
      _
    // Predicated region
    $region62: #{network_forward.1} parent=1 // pred_check
      _
    $region63: #{network_forward.1} parent=1 // pred_check_branch
      %110 = sbr.rel (0) target = $region65
    $region64: #{network_forward.1} parent=1 // pred_region
      %111 = dma.done [#allocation6], 64
    $region65: #{network_forward.1} parent=1 // pred_fallthru
      _
    // Predicated region
    $region66: #{network_forward.1} parent=1 // pred_check
      _
    $region67: #{network_forward.1} parent=1 // pred_check_branch
      %113 = sbr.rel (0) target = $region69
    $region68: #{network_forward.1} parent=1 // pred_region
      %114 = dma.done [#allocation9], 16
    $region69: #{network_forward.1} parent=1 // pred_fallthru
      _
    // Predicated region
    $region70: #{network_forward.1} parent=1 // pred_check
      _
    $region71: #{network_forward.1} parent=1 // pred_check_branch
      %116 = sbr.rel (0) target = $region73
    $region72: #{network_forward.1} parent=1 // pred_region
      %117 = dma.done [#allocation9], 16
    $region73: #{network_forward.1} parent=1 // pred_fallthru
      _
    // Predicated region
    $region74: #{network_forward.1} parent=1 // pred_check
      _
    $region75: #{network_forward.1} parent=1 // pred_check_branch
      %119 = sbr.rel (0) target = $region77
    $region76: #{network_forward.1} parent=1 // pred_region
      %120 = dma.done [#allocation12], 16
    $region77: #{network_forward.1} parent=1 // pred_fallthru
      _
    %v121 = vld [vmem:[%s0] sm:$0x3]
    %v122 = vld [vmem:[%s2] sm:$0xff]
    %v123 = vld [vmem:[%s2 + $0x8] sm:$0xff]
    %v124 = vld [vmem:[%s2 + $0x10] sm:$0xff]
    %v125 = vld [vmem:[%s2 + $0x18] sm:$0xff]
    %v126 = vld [vmem:[%s2 + $0x20] sm:$0xff]
    %v127 = vld [vmem:[%s2 + $0x28] sm:$0xff]
    %v128 = vld [vmem:[%s2 + $0x30] sm:$0xff]
    %v129 = vld [vmem:[%s2 + $0x38] sm:$0xff]
    %v130 = vld [vmem:[%s2 + $0x40] sm:$0xff]
    %v131 = vld [vmem:[%s2 + $0x48] sm:$0xff]
    %v132 = vld [vmem:[%s2 + $0x50] sm:$0xff]
    %v133 = vld [vmem:[%s2 + $0x58] sm:$0xff]
    %v134 = vld [vmem:[%s2 + $0x60] sm:$0xff]
    %v135 = vld [vmem:[%s2 + $0x68] sm:$0xff]
    %v136 = vld [vmem:[%s2 + $0x70] sm:$0xff]
    %v137 = vld [vmem:[%s2 + $0x78] sm:$0xff]
    %v138 = vld [vmem:[%s3] sm:$0xff]
    %v139 = vld [vmem:[#allocation2] sm:$0xff]
    %v140 = vld [vmem:[#allocation2 + $0x8] sm:$0xff]
    %v141 = vld [vmem:[#allocation2 + $0x10] sm:$0xff]
    %v142 = vld [vmem:[#allocation2 + $0x18] sm:$0xff]
    %v143 = vld [vmem:[#allocation2 + $0x20] sm:$0xff]
    %v144 = vld [vmem:[#allocation2 + $0x28] sm:$0xff]
    %v145 = vld [vmem:[#allocation2 + $0x30] sm:$0xff]
    %v146 = vld [vmem:[#allocation2 + $0x38] sm:$0xff]
    %vm147 = vcmask 523264
    %v149 = vsel %vm147, %v121, 0
    %151 = vmatprep.subr.mxu0 0.0
    %152 = vmatpush1.msra.mxu0 0.0
    %153 = vmatprep.subr.mxu0 0.0
    %154 = vmatpush1.msra.mxu0 0.0
    %155 = vmatprep.subr.mxu0 0.0
    %156 = vmatpush1.msra.mxu0 0.0
    %157 = vmatprep.subr.mxu0 0.0
    %158 = vmatpush1.msra.mxu0 0.0
    %159 = vmatprep.subr.mxu0 0.0
    %160 = vmatpush1.msra.mxu0 0.0
    %161 = vmatprep.subr.mxu0 0.0
    %162 = vmatpush1.msra.mxu0 0.0
    %163 = vmatprep.subr.mxu0 0.0
    %164 = vmatpush1.msra.mxu0 0.0
    %165 = vmatprep.subr.mxu0 0.0
    %166 = vmatpush1.msra.mxu0 0.0
    %167 = vmatprep.subr.mxu0 0.0
    %168 = vmatpush1.msra.mxu0 %v146
    %169 = vmatprep.subr.mxu0 0.0
    %170 = vmatpush1.msra.mxu0 %v145
    %171 = vmatprep.subr.mxu0 0.0
    %172 = vmatpush1.msra.mxu0 %v144
    %173 = vmatprep.subr.mxu0 0.0
    %174 = vmatpush1.msra.mxu0 %v143
    %175 = vmatprep.subr.mxu0 0.0
    %176 = vmatpush1.msra.mxu0 %v142
    %177 = vmatprep.subr.mxu0 0.0
    %178 = vmatpush1.msra.mxu0 %v141
    %179 = vmatprep.subr.mxu0 0.0
    %180 = vmatpush1.msra.mxu0 %v140
    %181 = vmatprep.subr.mxu0 0.0
    %182 = vmatpush1.msra.mxu0 %v139
    %183 = vmatprep.subr.mxu0 0.0
    %184 = vmatpush2.msra.mxu0 0.0
    %185 = vmatprep.subr.mxu0 0.0
    %186 = vmatpush2.msra.mxu0 0.0
    %187 = vmatprep.subr.mxu0 0.0
    %188 = vmatpush2.msra.mxu0 0.0
    %189 = vmatprep.subr.mxu0 0.0
    %190 = vmatpush2.msra.mxu0 0.0
    %191 = vmatprep.subr.mxu0 0.0
    %192 = vmatpush2.msra.mxu0 0.0
    %193 = vmatprep.subr.mxu0 0.0
    %194 = vmatpush2.msra.mxu0 0.0
    %195 = vmatprep.subr.mxu0 0.0
    %196 = vmatpush2.msra.mxu0 0.0
    %197 = vmatprep.subr.mxu0 0.0
    %198 = vmatpush2.msra.mxu0 0.0
    %199 = vmatprep.subr.mxu0 0.0
    %200 = vmatpush2.msra.mxu0 0.0
    %201 = vmatprep.subr.mxu0 0.0
    %202 = vmatpush2.msra.mxu0 0.0
    %203 = vmatprep.subr.mxu0 0.0
    %204 = vmatpush2.msra.mxu0 0.0
    %205 = vmatprep.subr.mxu0 0.0
    %206 = vmatpush2.msra.mxu0 0.0
    %207 = vmatprep.subr.mxu0 0.0
    %208 = vmatpush2.msra.mxu0 0.0
    %209 = vmatprep.subr.mxu0 0.0
    %210 = vmatpush2.msra.mxu0 0.0
    %211 = vmatprep.subr.mxu0 0.0
    %212 = vmatpush2.msra.mxu0 0.0
    %213 = vmatprep.subr.mxu0 0.0
    %214 = vmatpush2.msra.mxu0 0.0
    %215 = vmatprep.mubr.f32.mxu0 0.0
    %216 = vmatmul.mubr.f32.gmra.mxu0 %v149
    %v217 = vpop.f32.mrf.mxu0
    %v218 = vadd.f32 0.0, %v217
    %v219 = vpop.f32.mrf.mxu0
    %220 = vdwg.mxu0
    %v221 = vmax.f32 %v218, 0.0
    %v222 = vld [vmem:[%s4] sm:$0xff]
    %v223 = vld [vmem:[%s4 + $0x8] sm:$0xff]
    %v224 = vld [vmem:[%s4 + $0x10] sm:$0xff]
    %v225 = vld [vmem:[%s4 + $0x18] sm:$0xff]
    %v226 = vld [vmem:[%s4 + $0x20] sm:$0xff]
    %v227 = vld [vmem:[%s4 + $0x28] sm:$0xff]
    %v228 = vld [vmem:[%s4 + $0x30] sm:$0xff]
    %v229 = vld [vmem:[%s4 + $0x38] sm:$0xff]
    %v230 = vld [vmem:[%s4 + $0x40] sm:$0xff]
    %v231 = vld [vmem:[%s4 + $0x48] sm:$0xff]
    %v232 = vld [vmem:[%s4 + $0x50] sm:$0xff]
    %v233 = vld [vmem:[%s4 + $0x58] sm:$0xff]
    %v234 = vld [vmem:[%s4 + $0x60] sm:$0xff]
    %v235 = vld [vmem:[%s4 + $0x68] sm:$0xff]
    %v236 = vld [vmem:[%s4 + $0x70] sm:$0xff]
    %v237 = vld [vmem:[%s4 + $0x78] sm:$0xff]
    %238 = vmatprep.subr.mxu0 0.0
    %239 = vmatpush1.msra.mxu0 %v237
    %240 = vmatprep.subr.mxu0 0.0
    %241 = vmatpush1.msra.mxu0 %v236
    %242 = vmatprep.subr.mxu0 0.0
    %243 = vmatpush1.msra.mxu0 %v235
    %244 = vmatprep.subr.mxu0 0.0
    %245 = vmatpush1.msra.mxu0 %v234
    %246 = vmatprep.subr.mxu0 0.0
    %247 = vmatpush1.msra.mxu0 %v233
    %248 = vmatprep.subr.mxu0 0.0
    %249 = vmatpush1.msra.mxu0 %v232
    %250 = vmatprep.subr.mxu0 0.0
    %251 = vmatpush1.msra.mxu0 %v231
    %252 = vmatprep.subr.mxu0 0.0
    %253 = vmatpush1.msra.mxu0 %v230
    %254 = vmatprep.subr.mxu0 0.0
    %255 = vmatpush1.msra.mxu0 %v229
    %256 = vmatprep.subr.mxu0 0.0
    %257 = vmatpush1.msra.mxu0 %v228
    %258 = vmatprep.subr.mxu0 0.0
    %259 = vmatpush1.msra.mxu0 %v227
    %260 = vmatprep.subr.mxu0 0.0
    %261 = vmatpush1.msra.mxu0 %v226
    %262 = vmatprep.subr.mxu0 0.0
    %263 = vmatpush1.msra.mxu0 %v225
    %264 = vmatprep.subr.mxu0 0.0
    %265 = vmatpush1.msra.mxu0 %v224
    %266 = vmatprep.subr.mxu0 0.0
    %267 = vmatpush1.msra.mxu0 %v223
    %268 = vmatprep.subr.mxu0 0.0
    %269 = vmatpush1.msra.mxu0 %v222
    %270 = vmatprep.subr.mxu0 0.0
    %271 = vmatpush2.msra.mxu0 0.0
    %272 = vmatprep.subr.mxu0 0.0
    %273 = vmatpush2.msra.mxu0 0.0
    %274 = vmatprep.subr.mxu0 0.0
    %275 = vmatpush2.msra.mxu0 0.0
    %276 = vmatprep.subr.mxu0 0.0
    %277 = vmatpush2.msra.mxu0 0.0
    %278 = vmatprep.subr.mxu0 0.0
    %279 = vmatpush2.msra.mxu0 0.0
    %280 = vmatprep.subr.mxu0 0.0
    %281 = vmatpush2.msra.mxu0 0.0
    %282 = vmatprep.subr.mxu0 0.0
    %283 = vmatpush2.msra.mxu0 0.0
    %284 = vmatprep.subr.mxu0 0.0
    %285 = vmatpush2.msra.mxu0 0.0
    %286 = vmatprep.subr.mxu0 0.0
    %287 = vmatpush2.msra.mxu0 0.0
    %288 = vmatprep.subr.mxu0 0.0
    %289 = vmatpush2.msra.mxu0 0.0
    %290 = vmatprep.subr.mxu0 0.0
    %291 = vmatpush2.msra.mxu0 0.0
    %292 = vmatprep.subr.mxu0 0.0
    %293 = vmatpush2.msra.mxu0 0.0
    %294 = vmatprep.subr.mxu0 0.0
    %295 = vmatpush2.msra.mxu0 0.0
    %296 = vmatprep.subr.mxu0 0.0
    %297 = vmatpush2.msra.mxu0 0.0
    %298 = vmatprep.subr.mxu0 0.0
    %299 = vmatpush2.msra.mxu0 0.0
    %300 = vmatprep.subr.mxu0 0.0
    %301 = vmatpush2.msra.mxu0 0.0
    %302 = vmatprep.mubr.f32.mxu0 0.0
    %303 = vmatmul.mubr.f32.gmra.mxu0 %v221
    %v304 = vpop.f32.mrf.mxu0
    %v305 = vadd.f32 0.0, %v304
    %v306 = vpop.f32.mrf.mxu0
    %307 = vdwg.mxu0
    %v308 = vld [vmem:[#allocation5] sm:$0x1]
    %v309 = vld [vmem:[#allocation7] sm:$0x1]
    %vm310 = vcmask 1041408
    %v311 = vsel %vm310, %v305, 0.0
    %v312 = vrot.slane %v311, 4
    %v313 = vadd.f32 %v311, %v312
    %v314 = vrot.slane %v313, 2
    %v315 = vadd.f32 %v313, %v314
    %v316 = vrot.slane %v315, 1
    %v317 = vadd.f32 %v315, %v316
    %318 = vmatprep.subr.mxu0 0.0
    %319 = vmatpush1.msra.mxu0 %v137
    %320 = vmatprep.subr.mxu0 0.0
    %321 = vmatpush1.msra.mxu0 %v136
    %322 = vmatprep.subr.mxu0 0.0
    %323 = vmatpush1.msra.mxu0 %v135
    %324 = vmatprep.subr.mxu0 0.0
    %325 = vmatpush1.msra.mxu0 %v134
    %326 = vmatprep.subr.mxu0 0.0
    %327 = vmatpush1.msra.mxu0 %v133
    %328 = vmatprep.subr.mxu0 0.0
    %329 = vmatpush1.msra.mxu0 %v132
    %330 = vmatprep.subr.mxu0 0.0
    %331 = vmatpush1.msra.mxu0 %v131
    %332 = vmatprep.subr.mxu0 0.0
    %333 = vmatpush1.msra.mxu0 %v130
    %334 = vmatprep.subr.mxu0 0.0
    %335 = vmatpush1.msra.mxu0 %v129
    %336 = vmatprep.subr.mxu0 0.0
    %337 = vmatpush1.msra.mxu0 %v128
    %338 = vmatprep.subr.mxu0 0.0
    %339 = vmatpush1.msra.mxu0 %v127
    %340 = vmatprep.subr.mxu0 0.0
    %341 = vmatpush1.msra.mxu0 %v126
    %342 = vmatprep.subr.mxu0 0.0
    %343 = vmatpush1.msra.mxu0 %v125
    %344 = vmatprep.subr.mxu0 0.0
    %345 = vmatpush1.msra.mxu0 %v124
    %346 = vmatprep.subr.mxu0 0.0
    %347 = vmatpush1.msra.mxu0 %v123
    %348 = vmatprep.subr.mxu0 0.0
    %349 = vmatpush1.msra.mxu0 %v122
    %350 = vmatprep.subr.mxu0 0.0
    %351 = vmatpush2.msra.mxu0 0.0
    %352 = vmatprep.subr.mxu0 0.0
    %353 = vmatpush2.msra.mxu0 0.0
    %354 = vmatprep.subr.mxu0 0.0
    %355 = vmatpush2.msra.mxu0 0.0
    %356 = vmatprep.subr.mxu0 0.0
    %357 = vmatpush2.msra.mxu0 0.0
    %358 = vmatprep.subr.mxu0 0.0
    %359 = vmatpush2.msra.mxu0 0.0
    %360 = vmatprep.subr.mxu0 0.0
    %361 = vmatpush2.msra.mxu0 0.0
    %362 = vmatprep.subr.mxu0 0.0
    %363 = vmatpush2.msra.mxu0 0.0
    %364 = vmatprep.subr.mxu0 0.0
    %365 = vmatpush2.msra.mxu0 0.0
    %366 = vmatprep.subr.mxu0 0.0
    %367 = vmatpush2.msra.mxu0 0.0
    %368 = vmatprep.subr.mxu0 0.0
    %369 = vmatpush2.msra.mxu0 0.0
    %370 = vmatprep.subr.mxu0 0.0
    %371 = vmatpush2.msra.mxu0 0.0
    %372 = vmatprep.subr.mxu0 0.0
    %373 = vmatpush2.msra.mxu0 0.0
    %374 = vmatprep.subr.mxu0 0.0
    %375 = vmatpush2.msra.mxu0 0.0
    %376 = vmatprep.subr.mxu0 0.0
    %377 = vmatpush2.msra.mxu0 0.0
    %378 = vmatprep.subr.mxu0 0.0
    %379 = vmatpush2.msra.mxu0 0.0
    %380 = vmatprep.subr.mxu0 0.0
    %381 = vmatpush2.msra.mxu0 0.0
    %382 = vmatprep.mubr.f32.mxu0 0.0
    %383 = vmatmul.mubr.f32.gmra.mxu0 %v317
    %v384 = vpop.f32.mrf.mxu0
    %v385 = vadd.f32 0.0, %v384
    %v386 = vpop.f32.mrf.mxu0
    %387 = vdwg.mxu0
    %v388 = vmul.f32 %v305, %v305
    %v389 = vsel %vm310, %v388, 0.0
    %v390 = vrot.slane %v389, 4
    %v391 = vadd.f32 %v389, %v390
    %v392 = vrot.slane %v391, 2
    %v393 = vadd.f32 %v391, %v392
    %v394 = vrot.slane %v393, 1
    %v395 = vadd.f32 %v393, %v394
    %396 = vmatprep.subr.mxu0 0.0
    %397 = vmatpush1.msra.mxu0 %v137
    %398 = vmatprep.subr.mxu0 0.0
    %399 = vmatpush1.msra.mxu0 %v136
    %400 = vmatprep.subr.mxu0 0.0
    %401 = vmatpush1.msra.mxu0 %v135
    %402 = vmatprep.subr.mxu0 0.0
    %403 = vmatpush1.msra.mxu0 %v134
    %404 = vmatprep.subr.mxu0 0.0
    %405 = vmatpush1.msra.mxu0 %v133
    %406 = vmatprep.subr.mxu0 0.0
    %407 = vmatpush1.msra.mxu0 %v132
    %408 = vmatprep.subr.mxu0 0.0
    %409 = vmatpush1.msra.mxu0 %v131
    %410 = vmatprep.subr.mxu0 0.0
    %411 = vmatpush1.msra.mxu0 %v130
    %412 = vmatprep.subr.mxu0 0.0
    %413 = vmatpush1.msra.mxu0 %v129
    %414 = vmatprep.subr.mxu0 0.0
    %415 = vmatpush1.msra.mxu0 %v128
    %416 = vmatprep.subr.mxu0 0.0
    %417 = vmatpush1.msra.mxu0 %v127
    %418 = vmatprep.subr.mxu0 0.0
    %419 = vmatpush1.msra.mxu0 %v126
    %420 = vmatprep.subr.mxu0 0.0
    %421 = vmatpush1.msra.mxu0 %v125
    %422 = vmatprep.subr.mxu0 0.0
    %423 = vmatpush1.msra.mxu0 %v124
    %424 = vmatprep.subr.mxu0 0.0
    %425 = vmatpush1.msra.mxu0 %v123
    %426 = vmatprep.subr.mxu0 0.0
    %427 = vmatpush1.msra.mxu0 %v122
    %428 = vmatprep.subr.mxu0 0.0
    %429 = vmatpush2.msra.mxu0 0.0
    %430 = vmatprep.subr.mxu0 0.0
    %431 = vmatpush2.msra.mxu0 0.0
    %432 = vmatprep.subr.mxu0 0.0
    %433 = vmatpush2.msra.mxu0 0.0
    %434 = vmatprep.subr.mxu0 0.0
    %435 = vmatpush2.msra.mxu0 0.0
    %436 = vmatprep.subr.mxu0 0.0
    %437 = vmatpush2.msra.mxu0 0.0
    %438 = vmatprep.subr.mxu0 0.0
    %439 = vmatpush2.msra.mxu0 0.0
    %440 = vmatprep.subr.mxu0 0.0
    %441 = vmatpush2.msra.mxu0 0.0
    %442 = vmatprep.subr.mxu0 0.0
    %443 = vmatpush2.msra.mxu0 0.0
    %444 = vmatprep.subr.mxu0 0.0
    %445 = vmatpush2.msra.mxu0 0.0
    %446 = vmatprep.subr.mxu0 0.0
    %447 = vmatpush2.msra.mxu0 0.0
    %448 = vmatprep.subr.mxu0 0.0
    %449 = vmatpush2.msra.mxu0 0.0
    %450 = vmatprep.subr.mxu0 0.0
    %451 = vmatpush2.msra.mxu0 0.0
    %452 = vmatprep.subr.mxu0 0.0
    %453 = vmatpush2.msra.mxu0 0.0
    %454 = vmatprep.subr.mxu0 0.0
    %455 = vmatpush2.msra.mxu0 0.0
    %456 = vmatprep.subr.mxu0 0.0
    %457 = vmatpush2.msra.mxu0 0.0
    %458 = vmatprep.subr.mxu0 0.0
    %459 = vmatpush2.msra.mxu0 0.0
    %460 = vmatprep.mubr.f32.mxu0 0.0
    %461 = vmatmul.mubr.f32.gmra.mxu0 %v395
    %v462 = vpop.f32.mrf.mxu0
    %v463 = vadd.f32 0.0, %v462
    %v464 = vpop.f32.mrf.mxu0
    %465 = vdwg.mxu0
    %v466 = vmul.f32 %v385, 0.03125
    %v467 = vmul.f32 %v463, 0.03125
    %v468 = vmul.f32 %v466, %v466
    %v469 = vsub.f32 %v467, %v468
    %v470 = vadd.f32 %v469, 1e-05
    %v471 = vrsqrt.pop %v470
    %vm472 = vcmask 64512
    %v474 = vsel %vm472, %v471, 0
    %476 = vmatprep.subr.mxu0 0.0
    %477 = vmatpush1.msra.mxu0 0.0
    %478 = vmatprep.subr.mxu0 0.0
    %479 = vmatpush1.msra.mxu0 0.0
    %480 = vmatprep.subr.mxu0 0.0
    %481 = vmatpush1.msra.mxu0 0.0
    %482 = vmatprep.subr.mxu0 0.0
    %483 = vmatpush1.msra.mxu0 0.0
    %484 = vmatprep.subr.mxu0 0.0
    %485 = vmatpush1.msra.mxu0 0.0
    %486 = vmatprep.subr.mxu0 0.0
    %487 = vmatpush1.msra.mxu0 0.0
    %488 = vmatprep.subr.mxu0 0.0
    %489 = vmatpush1.msra.mxu0 0.0
    %490 = vmatprep.subr.mxu0 0.0
    %491 = vmatpush1.msra.mxu0 0.0
    %492 = vmatprep.subr.mxu0 0.0
    %493 = vmatpush1.msra.mxu0 0.0
    %494 = vmatprep.subr.mxu0 0.0
    %495 = vmatpush1.msra.mxu0 0.0
    %496 = vmatprep.subr.mxu0 0.0
    %497 = vmatpush1.msra.mxu0 0.0
    %498 = vmatprep.subr.mxu0 0.0
    %499 = vmatpush1.msra.mxu0 0.0
    %500 = vmatprep.subr.mxu0 0.0
    %501 = vmatpush1.msra.mxu0 0.0
    %502 = vmatprep.subr.mxu0 0.0
    %503 = vmatpush1.msra.mxu0 0.0
    %504 = vmatprep.subr.mxu0 0.0
    %505 = vmatpush1.msra.mxu0 0.0
    %506 = vmatprep.subr.mxu0 0.0
    %507 = vmatpush1.msra.mxu0 %v138
    %508 = vmatprep.subr.mxu0 0.0
    %509 = vmatpush2.msra.mxu0 0.0
    %510 = vmatprep.subr.mxu0 0.0
    %511 = vmatpush2.msra.mxu0 0.0
    %512 = vmatprep.subr.mxu0 0.0
    %513 = vmatpush2.msra.mxu0 0.0
    %514 = vmatprep.subr.mxu0 0.0
    %515 = vmatpush2.msra.mxu0 0.0
    %516 = vmatprep.subr.mxu0 0.0
    %517 = vmatpush2.msra.mxu0 0.0
    %518 = vmatprep.subr.mxu0 0.0
    %519 = vmatpush2.msra.mxu0 0.0
    %520 = vmatprep.subr.mxu0 0.0
    %521 = vmatpush2.msra.mxu0 0.0
    %522 = vmatprep.subr.mxu0 0.0
    %523 = vmatpush2.msra.mxu0 0.0
    %524 = vmatprep.subr.mxu0 0.0
    %525 = vmatpush2.msra.mxu0 0.0
    %526 = vmatprep.subr.mxu0 0.0
    %527 = vmatpush2.msra.mxu0 0.0
    %528 = vmatprep.subr.mxu0 0.0
    %529 = vmatpush2.msra.mxu0 0.0
    %530 = vmatprep.subr.mxu0 0.0
    %531 = vmatpush2.msra.mxu0 0.0
    %532 = vmatprep.subr.mxu0 0.0
    %533 = vmatpush2.msra.mxu0 0.0
    %534 = vmatprep.subr.mxu0 0.0
    %535 = vmatpush2.msra.mxu0 0.0
    %536 = vmatprep.subr.mxu0 0.0
    %537 = vmatpush2.msra.mxu0 0.0
    %538 = vmatprep.subr.mxu0 0.0
    %539 = vmatpush2.msra.mxu0 0.0
    %540 = vmatprep.mubr.f32.mxu0 0.0
    %541 = vmatmul.mubr.f32.gmra.mxu0 %v474
    %v542 = vpop.f32.mrf.mxu0
    %v543 = vadd.f32 0.0, %v542
    %v544 = vpop.f32.mrf.mxu0
    %545 = vdwg.mxu0
    %v547 = vsel %vm472, %v466, 0
    %549 = vmatprep.subr.mxu0 0.0
    %550 = vmatpush1.msra.mxu0 0.0
    %551 = vmatprep.subr.mxu0 0.0
    %552 = vmatpush1.msra.mxu0 0.0
    %553 = vmatprep.subr.mxu0 0.0
    %554 = vmatpush1.msra.mxu0 0.0
    %555 = vmatprep.subr.mxu0 0.0
    %556 = vmatpush1.msra.mxu0 0.0
    %557 = vmatprep.subr.mxu0 0.0
    %558 = vmatpush1.msra.mxu0 0.0
    %559 = vmatprep.subr.mxu0 0.0
    %560 = vmatpush1.msra.mxu0 0.0
    %561 = vmatprep.subr.mxu0 0.0
    %562 = vmatpush1.msra.mxu0 0.0
    %563 = vmatprep.subr.mxu0 0.0
    %564 = vmatpush1.msra.mxu0 0.0
    %565 = vmatprep.subr.mxu0 0.0
    %566 = vmatpush1.msra.mxu0 0.0
    %567 = vmatprep.subr.mxu0 0.0
    %568 = vmatpush1.msra.mxu0 0.0
    %569 = vmatprep.subr.mxu0 0.0
    %570 = vmatpush1.msra.mxu0 0.0
    %571 = vmatprep.subr.mxu0 0.0
    %572 = vmatpush1.msra.mxu0 0.0
    %573 = vmatprep.subr.mxu0 0.0
    %574 = vmatpush1.msra.mxu0 0.0
    %575 = vmatprep.subr.mxu0 0.0
    %576 = vmatpush1.msra.mxu0 0.0
    %577 = vmatprep.subr.mxu0 0.0
    %578 = vmatpush1.msra.mxu0 0.0
    %579 = vmatprep.subr.mxu0 0.0
    %580 = vmatpush1.msra.mxu0 %v138
    %581 = vmatprep.subr.mxu0 0.0
    %582 = vmatpush2.msra.mxu0 0.0
    %583 = vmatprep.subr.mxu0 0.0
    %584 = vmatpush2.msra.mxu0 0.0
    %585 = vmatprep.subr.mxu0 0.0
    %586 = vmatpush2.msra.mxu0 0.0
    %587 = vmatprep.subr.mxu0 0.0
    %588 = vmatpush2.msra.mxu0 0.0
    %589 = vmatprep.subr.mxu0 0.0
    %590 = vmatpush2.msra.mxu0 0.0
    %591 = vmatprep.subr.mxu0 0.0
    %592 = vmatpush2.msra.mxu0 0.0
    %593 = vmatprep.subr.mxu0 0.0
    %594 = vmatpush2.msra.mxu0 0.0
    %595 = vmatprep.subr.mxu0 0.0
    %596 = vmatpush2.msra.mxu0 0.0
    %597 = vmatprep.subr.mxu0 0.0
    %598 = vmatpush2.msra.mxu0 0.0
    %599 = vmatprep.subr.mxu0 0.0
    %600 = vmatpush2.msra.mxu0 0.0
    %601 = vmatprep.subr.mxu0 0.0
    %602 = vmatpush2.msra.mxu0 0.0
    %603 = vmatprep.subr.mxu0 0.0
    %604 = vmatpush2.msra.mxu0 0.0
    %605 = vmatprep.subr.mxu0 0.0
    %606 = vmatpush2.msra.mxu0 0.0
    %607 = vmatprep.subr.mxu0 0.0
    %608 = vmatpush2.msra.mxu0 0.0
    %609 = vmatprep.subr.mxu0 0.0
    %610 = vmatpush2.msra.mxu0 0.0
    %611 = vmatprep.subr.mxu0 0.0
    %612 = vmatpush2.msra.mxu0 0.0
    %613 = vmatprep.mubr.f32.mxu0 0.0
    %614 = vmatmul.mubr.f32.gmra.mxu0 %v547
    %v615 = vpop.f32.mrf.mxu0
    %v616 = vadd.f32 0.0, %v615
    %v617 = vpop.f32.mrf.mxu0
    %618 = vdwg.mxu0
    %v619 = vmul.f32 %v543, %v308
    %v620 = vmul.f32 %v616, %v619
    %v621 = vsub.f32 %v309, %v620
    %v622 = vlaneseq
    %v623 = vshrl.u32 %v622, 7
    %v624 = vsub.s32 0, %v623
    %v625 = vrot.slane %v619, %v624
    %v626 = vmul.f32 %v305, %v625
    %v628 = vlaneseq
    %v629 = vshrl.u32 %v628, 7
    %v630 = vsub.s32 0, %v629
    %v631 = vrot.slane %v621, %v630
    %v633 = vadd.f32 %v626, %v631
    %v634 = vmax.f32 %v633, 0.0
    %s635 = scalar_lea.vmem %s4, 128
    %v636 = vld [vmem:[%s635] sm:$0xff]
    %v637 = vld [vmem:[%s635 + $0x8] sm:$0xff]
    %v638 = vld [vmem:[%s635 + $0x10] sm:$0xff]
    %v639 = vld [vmem:[%s635 + $0x18] sm:$0xff]
    %v640 = vld [vmem:[%s635 + $0x20] sm:$0xff]
    %v641 = vld [vmem:[%s635 + $0x28] sm:$0xff]
    %v642 = vld [vmem:[%s635 + $0x30] sm:$0xff]
    %v643 = vld [vmem:[%s635 + $0x38] sm:$0xff]
    %v644 = vld [vmem:[%s635 + $0x40] sm:$0xff]
    %v645 = vld [vmem:[%s635 + $0x48] sm:$0xff]
    %v646 = vld [vmem:[%s635 + $0x50] sm:$0xff]
    %v647 = vld [vmem:[%s635 + $0x58] sm:$0xff]
    %v648 = vld [vmem:[%s635 + $0x60] sm:$0xff]
    %v649 = vld [vmem:[%s635 + $0x68] sm:$0xff]
    %v650 = vld [vmem:[%s635 + $0x70] sm:$0xff]
    %v651 = vld [vmem:[%s635 + $0x78] sm:$0xff]
    %652 = vmatprep.subr.mxu0 0.0
    %653 = vmatpush1.msra.mxu0 %v651
    %654 = vmatprep.subr.mxu0 0.0
    %655 = vmatpush1.msra.mxu0 %v650
    %656 = vmatprep.subr.mxu0 0.0
    %657 = vmatpush1.msra.mxu0 %v649
    %658 = vmatprep.subr.mxu0 0.0
    %659 = vmatpush1.msra.mxu0 %v648
    %660 = vmatprep.subr.mxu0 0.0
    %661 = vmatpush1.msra.mxu0 %v647
    %662 = vmatprep.subr.mxu0 0.0
    %663 = vmatpush1.msra.mxu0 %v646
    %664 = vmatprep.subr.mxu0 0.0
    %665 = vmatpush1.msra.mxu0 %v645
    %666 = vmatprep.subr.mxu0 0.0
    %667 = vmatpush1.msra.mxu0 %v644
    %668 = vmatprep.subr.mxu0 0.0
    %669 = vmatpush1.msra.mxu0 %v643
    %670 = vmatprep.subr.mxu0 0.0
    %671 = vmatpush1.msra.mxu0 %v642
    %672 = vmatprep.subr.mxu0 0.0
    %673 = vmatpush1.msra.mxu0 %v641
    %674 = vmatprep.subr.mxu0 0.0
    %675 = vmatpush1.msra.mxu0 %v640
    %676 = vmatprep.subr.mxu0 0.0
    %677 = vmatpush1.msra.mxu0 %v639
    %678 = vmatprep.subr.mxu0 0.0
    %679 = vmatpush1.msra.mxu0 %v638
    %680 = vmatprep.subr.mxu0 0.0
    %681 = vmatpush1.msra.mxu0 %v637
    %682 = vmatprep.subr.mxu0 0.0
    %683 = vmatpush1.msra.mxu0 %v636
    %684 = vmatprep.subr.mxu0 0.0
    %685 = vmatpush2.msra.mxu0 0.0
    %686 = vmatprep.subr.mxu0 0.0
    %687 = vmatpush2.msra.mxu0 0.0
    %688 = vmatprep.subr.mxu0 0.0
    %689 = vmatpush2.msra.mxu0 0.0
    %690 = vmatprep.subr.mxu0 0.0
    %691 = vmatpush2.msra.mxu0 0.0
    %692 = vmatprep.subr.mxu0 0.0
    %693 = vmatpush2.msra.mxu0 0.0
    %694 = vmatprep.subr.mxu0 0.0
    %695 = vmatpush2.msra.mxu0 0.0
    %696 = vmatprep.subr.mxu0 0.0
    %697 = vmatpush2.msra.mxu0 0.0
    %698 = vmatprep.subr.mxu0 0.0
    %699 = vmatpush2.msra.mxu0 0.0
    %700 = vmatprep.subr.mxu0 0.0
    %701 = vmatpush2.msra.mxu0 0.0
    %702 = vmatprep.subr.mxu0 0.0
    %703 = vmatpush2.msra.mxu0 0.0
    %704 = vmatprep.subr.mxu0 0.0
    %705 = vmatpush2.msra.mxu0 0.0
    %706 = vmatprep.subr.mxu0 0.0
    %707 = vmatpush2.msra.mxu0 0.0
    %708 = vmatprep.subr.mxu0 0.0
    %709 = vmatpush2.msra.mxu0 0.0
    %710 = vmatprep.subr.mxu0 0.0
    %711 = vmatpush2.msra.mxu0 0.0
    %712 = vmatprep.subr.mxu0 0.0
    %713 = vmatpush2.msra.mxu0 0.0
    %714 = vmatprep.subr.mxu0 0.0
    %715 = vmatpush2.msra.mxu0 0.0
    %716 = vmatprep.mubr.f32.mxu0 0.0
    %717 = vmatmul.mubr.f32.gmra.mxu0 %v634
    %v718 = vpop.f32.mrf.mxu0
    %v719 = vadd.f32 0.0, %v718
    %v720 = vpop.f32.mrf.mxu0
    %721 = vdwg.mxu0
    %s722 = scalar_lea.vmem [#allocation5], 1
    %v723 = vld [vmem:[%s722] sm:$0x1]
    %s724 = scalar_lea.vmem [#allocation7], 1
    %v725 = vld [vmem:[%s724] sm:$0x1]
    %v726 = vsel %vm310, %v719, 0.0
    %v727 = vrot.slane %v726, 4
    %v728 = vadd.f32 %v726, %v727
    %v729 = vrot.slane %v728, 2
    %v730 = vadd.f32 %v728, %v729
    %v731 = vrot.slane %v730, 1
    %v732 = vadd.f32 %v730, %v731
    %733 = vmatprep.subr.mxu0 0.0
    %734 = vmatpush1.msra.mxu0 %v137
    %735 = vmatprep.subr.mxu0 0.0
    %736 = vmatpush1.msra.mxu0 %v136
    %737 = vmatprep.subr.mxu0 0.0
    %738 = vmatpush1.msra.mxu0 %v135
    %739 = vmatprep.subr.mxu0 0.0
    %740 = vmatpush1.msra.mxu0 %v134
    %741 = vmatprep.subr.mxu0 0.0
    %742 = vmatpush1.msra.mxu0 %v133
    %743 = vmatprep.subr.mxu0 0.0
    %744 = vmatpush1.msra.mxu0 %v132
    %745 = vmatprep.subr.mxu0 0.0
    %746 = vmatpush1.msra.mxu0 %v131
    %747 = vmatprep.subr.mxu0 0.0
    %748 = vmatpush1.msra.mxu0 %v130
    %749 = vmatprep.subr.mxu0 0.0
    %750 = vmatpush1.msra.mxu0 %v129
    %751 = vmatprep.subr.mxu0 0.0
    %752 = vmatpush1.msra.mxu0 %v128
    %753 = vmatprep.subr.mxu0 0.0
    %754 = vmatpush1.msra.mxu0 %v127
    %755 = vmatprep.subr.mxu0 0.0
    %756 = vmatpush1.msra.mxu0 %v126
    %757 = vmatprep.subr.mxu0 0.0
    %758 = vmatpush1.msra.mxu0 %v125
    %759 = vmatprep.subr.mxu0 0.0
    %760 = vmatpush1.msra.mxu0 %v124
    %761 = vmatprep.subr.mxu0 0.0
    %762 = vmatpush1.msra.mxu0 %v123
    %763 = vmatprep.subr.mxu0 0.0
    %764 = vmatpush1.msra.mxu0 %v122
    %765 = vmatprep.subr.mxu0 0.0
    %766 = vmatpush2.msra.mxu0 0.0
    %767 = vmatprep.subr.mxu0 0.0
    %768 = vmatpush2.msra.mxu0 0.0
    %769 = vmatprep.subr.mxu0 0.0
    %770 = vmatpush2.msra.mxu0 0.0
    %771 = vmatprep.subr.mxu0 0.0
    %772 = vmatpush2.msra.mxu0 0.0
    %773 = vmatprep.subr.mxu0 0.0
    %774 = vmatpush2.msra.mxu0 0.0
    %775 = vmatprep.subr.mxu0 0.0
    %776 = vmatpush2.msra.mxu0 0.0
    %777 = vmatprep.subr.mxu0 0.0
    %778 = vmatpush2.msra.mxu0 0.0
    %779 = vmatprep.subr.mxu0 0.0
    %780 = vmatpush2.msra.mxu0 0.0
    %781 = vmatprep.subr.mxu0 0.0
    %782 = vmatpush2.msra.mxu0 0.0
    %783 = vmatprep.subr.mxu0 0.0
    %784 = vmatpush2.msra.mxu0 0.0
    %785 = vmatprep.subr.mxu0 0.0
    %786 = vmatpush2.msra.mxu0 0.0
    %787 = vmatprep.subr.mxu0 0.0
    %788 = vmatpush2.msra.mxu0 0.0
    %789 = vmatprep.subr.mxu0 0.0
    %790 = vmatpush2.msra.mxu0 0.0
    %791 = vmatprep.subr.mxu0 0.0
    %792 = vmatpush2.msra.mxu0 0.0
    %793 = vmatprep.subr.mxu0 0.0
    %794 = vmatpush2.msra.mxu0 0.0
    %795 = vmatprep.subr.mxu0 0.0
    %796 = vmatpush2.msra.mxu0 0.0
    %797 = vmatprep.mubr.f32.mxu0 0.0
    %798 = vmatmul.mubr.f32.gmra.mxu0 %v732
    %v799 = vpop.f32.mrf.mxu0
    %v800 = vadd.f32 0.0, %v799
    %v801 = vpop.f32.mrf.mxu0
    %802 = vdwg.mxu0
    %v803 = vmul.f32 %v719, %v719
    %v804 = vsel %vm310, %v803, 0.0
    %v805 = vrot.slane %v804, 4
    %v806 = vadd.f32 %v804, %v805
    %v807 = vrot.slane %v806, 2
    %v808 = vadd.f32 %v806, %v807
    %v809 = vrot.slane %v808, 1
    %v810 = vadd.f32 %v808, %v809
    %811 = vmatprep.subr.mxu0 0.0
    %812 = vmatpush1.msra.mxu0 %v137
    %813 = vmatprep.subr.mxu0 0.0
    %814 = vmatpush1.msra.mxu0 %v136
    %815 = vmatprep.subr.mxu0 0.0
    %816 = vmatpush1.msra.mxu0 %v135
    %817 = vmatprep.subr.mxu0 0.0
    %818 = vmatpush1.msra.mxu0 %v134
    %819 = vmatprep.subr.mxu0 0.0
    %820 = vmatpush1.msra.mxu0 %v133
    %821 = vmatprep.subr.mxu0 0.0
    %822 = vmatpush1.msra.mxu0 %v132
    %823 = vmatprep.subr.mxu0 0.0
    %824 = vmatpush1.msra.mxu0 %v131
    %825 = vmatprep.subr.mxu0 0.0
    %826 = vmatpush1.msra.mxu0 %v130
    %827 = vmatprep.subr.mxu0 0.0
    %828 = vmatpush1.msra.mxu0 %v129
    %829 = vmatprep.subr.mxu0 0.0
    %830 = vmatpush1.msra.mxu0 %v128
    %831 = vmatprep.subr.mxu0 0.0
    %832 = vmatpush1.msra.mxu0 %v127
    %833 = vmatprep.subr.mxu0 0.0
    %834 = vmatpush1.msra.mxu0 %v126
    %835 = vmatprep.subr.mxu0 0.0
    %836 = vmatpush1.msra.mxu0 %v125
    %837 = vmatprep.subr.mxu0 0.0
    %838 = vmatpush1.msra.mxu0 %v124
    %839 = vmatprep.subr.mxu0 0.0
    %840 = vmatpush1.msra.mxu0 %v123
    %841 = vmatprep.subr.mxu0 0.0
    %842 = vmatpush1.msra.mxu0 %v122
    %843 = vmatprep.subr.mxu0 0.0
    %844 = vmatpush2.msra.mxu0 0.0
    %845 = vmatprep.subr.mxu0 0.0
    %846 = vmatpush2.msra.mxu0 0.0
    %847 = vmatprep.subr.mxu0 0.0
    %848 = vmatpush2.msra.mxu0 0.0
    %849 = vmatprep.subr.mxu0 0.0
    %850 = vmatpush2.msra.mxu0 0.0
    %851 = vmatprep.subr.mxu0 0.0
    %852 = vmatpush2.msra.mxu0 0.0
    %853 = vmatprep.subr.mxu0 0.0
    %854 = vmatpush2.msra.mxu0 0.0
    %855 = vmatprep.subr.mxu0 0.0
    %856 = vmatpush2.msra.mxu0 0.0
    %857 = vmatprep.subr.mxu0 0.0
    %858 = vmatpush2.msra.mxu0 0.0
    %859 = vmatprep.subr.mxu0 0.0
    %860 = vmatpush2.msra.mxu0 0.0
    %861 = vmatprep.subr.mxu0 0.0
    %862 = vmatpush2.msra.mxu0 0.0
    %863 = vmatprep.subr.mxu0 0.0
    %864 = vmatpush2.msra.mxu0 0.0
    %865 = vmatprep.subr.mxu0 0.0
    %866 = vmatpush2.msra.mxu0 0.0
    %867 = vmatprep.subr.mxu0 0.0
    %868 = vmatpush2.msra.mxu0 0.0
    %869 = vmatprep.subr.mxu0 0.0
    %870 = vmatpush2.msra.mxu0 0.0
    %871 = vmatprep.subr.mxu0 0.0
    %872 = vmatpush2.msra.mxu0 0.0
    %873 = vmatprep.subr.mxu0 0.0
    %874 = vmatpush2.msra.mxu0 0.0
    %875 = vmatprep.mubr.f32.mxu0 0.0
    %876 = vmatmul.mubr.f32.gmra.mxu0 %v810
    %v877 = vpop.f32.mrf.mxu0
    %v878 = vadd.f32 0.0, %v877
    %v879 = vpop.f32.mrf.mxu0
    %880 = vdwg.mxu0
    %v881 = vmul.f32 %v800, 0.03125
    %v882 = vmul.f32 %v878, 0.03125
    %v883 = vmul.f32 %v881, %v881
    %v884 = vsub.f32 %v882, %v883
    %v885 = vadd.f32 %v884, 1e-05
    %v886 = vrsqrt.pop %v885
    %v888 = vsel %vm472, %v886, 0
    %890 = vmatprep.subr.mxu0 0.0
    %891 = vmatpush1.msra.mxu0 0.0
    %892 = vmatprep.subr.mxu0 0.0
    %893 = vmatpush1.msra.mxu0 0.0
    %894 = vmatprep.subr.mxu0 0.0
    %895 = vmatpush1.msra.mxu0 0.0
    %896 = vmatprep.subr.mxu0 0.0
    %897 = vmatpush1.msra.mxu0 0.0
    %898 = vmatprep.subr.mxu0 0.0
    %899 = vmatpush1.msra.mxu0 0.0
    %900 = vmatprep.subr.mxu0 0.0
    %901 = vmatpush1.msra.mxu0 0.0
    %902 = vmatprep.subr.mxu0 0.0
    %903 = vmatpush1.msra.mxu0 0.0
    %904 = vmatprep.subr.mxu0 0.0
    %905 = vmatpush1.msra.mxu0 0.0
    %906 = vmatprep.subr.mxu0 0.0
    %907 = vmatpush1.msra.mxu0 0.0
    %908 = vmatprep.subr.mxu0 0.0
    %909 = vmatpush1.msra.mxu0 0.0
    %910 = vmatprep.subr.mxu0 0.0
    %911 = vmatpush1.msra.mxu0 0.0
    %912 = vmatprep.subr.mxu0 0.0
    %913 = vmatpush1.msra.mxu0 0.0
    %914 = vmatprep.subr.mxu0 0.0
    %915 = vmatpush1.msra.mxu0 0.0
    %916 = vmatprep.subr.mxu0 0.0
    %917 = vmatpush1.msra.mxu0 0.0
    %918 = vmatprep.subr.mxu0 0.0
    %919 = vmatpush1.msra.mxu0 0.0
    %920 = vmatprep.subr.mxu0 0.0
    %921 = vmatpush1.msra.mxu0 %v138
    %922 = vmatprep.subr.mxu0 0.0
    %923 = vmatpush2.msra.mxu0 0.0
    %924 = vmatprep.subr.mxu0 0.0
    %925 = vmatpush2.msra.mxu0 0.0
    %926 = vmatprep.subr.mxu0 0.0
    %927 = vmatpush2.msra.mxu0 0.0
    %928 = vmatprep.subr.mxu0 0.0
    %929 = vmatpush2.msra.mxu0 0.0
    %930 = vmatprep.subr.mxu0 0.0
    %931 = vmatpush2.msra.mxu0 0.0
    %932 = vmatprep.subr.mxu0 0.0
    %933 = vmatpush2.msra.mxu0 0.0
    %934 = vmatprep.subr.mxu0 0.0
    %935 = vmatpush2.msra.mxu0 0.0
    %936 = vmatprep.subr.mxu0 0.0
    %937 = vmatpush2.msra.mxu0 0.0
    %938 = vmatprep.subr.mxu0 0.0
    %939 = vmatpush2.msra.mxu0 0.0
    %940 = vmatprep.subr.mxu0 0.0
    %941 = vmatpush2.msra.mxu0 0.0
    %942 = vmatprep.subr.mxu0 0.0
    %943 = vmatpush2.msra.mxu0 0.0
    %944 = vmatprep.subr.mxu0 0.0
    %945 = vmatpush2.msra.mxu0 0.0
    %946 = vmatprep.subr.mxu0 0.0
    %947 = vmatpush2.msra.mxu0 0.0
    %948 = vmatprep.subr.mxu0 0.0
    %949 = vmatpush2.msra.mxu0 0.0
    %950 = vmatprep.subr.mxu0 0.0
    %951 = vmatpush2.msra.mxu0 0.0
    %952 = vmatprep.subr.mxu0 0.0
    %953 = vmatpush2.msra.mxu0 0.0
    %954 = vmatprep.mubr.f32.mxu0 0.0
    %955 = vmatmul.mubr.f32.gmra.mxu0 %v888
    %v956 = vpop.f32.mrf.mxu0
    %v957 = vadd.f32 0.0, %v956
    %v958 = vpop.f32.mrf.mxu0
    %959 = vdwg.mxu0
    %v961 = vsel %vm472, %v881, 0
    %963 = vmatprep.subr.mxu0 0.0
    %964 = vmatpush1.msra.mxu0 0.0
    %965 = vmatprep.subr.mxu0 0.0
    %966 = vmatpush1.msra.mxu0 0.0
    %967 = vmatprep.subr.mxu0 0.0
    %968 = vmatpush1.msra.mxu0 0.0
    %969 = vmatprep.subr.mxu0 0.0
    %970 = vmatpush1.msra.mxu0 0.0
    %971 = vmatprep.subr.mxu0 0.0
    %972 = vmatpush1.msra.mxu0 0.0
    %973 = vmatprep.subr.mxu0 0.0
    %974 = vmatpush1.msra.mxu0 0.0
    %975 = vmatprep.subr.mxu0 0.0
    %976 = vmatpush1.msra.mxu0 0.0
    %977 = vmatprep.subr.mxu0 0.0
    %978 = vmatpush1.msra.mxu0 0.0
    %979 = vmatprep.subr.mxu0 0.0
    %980 = vmatpush1.msra.mxu0 0.0
    %981 = vmatprep.subr.mxu0 0.0
    %982 = vmatpush1.msra.mxu0 0.0
    %983 = vmatprep.subr.mxu0 0.0
    %984 = vmatpush1.msra.mxu0 0.0
    %985 = vmatprep.subr.mxu0 0.0
    %986 = vmatpush1.msra.mxu0 0.0
    %987 = vmatprep.subr.mxu0 0.0
    %988 = vmatpush1.msra.mxu0 0.0
    %989 = vmatprep.subr.mxu0 0.0
    %990 = vmatpush1.msra.mxu0 0.0
    %991 = vmatprep.subr.mxu0 0.0
    %992 = vmatpush1.msra.mxu0 0.0
    %993 = vmatprep.subr.mxu0 0.0
    %994 = vmatpush1.msra.mxu0 %v138
    %995 = vmatprep.subr.mxu0 0.0
    %996 = vmatpush2.msra.mxu0 0.0
    %997 = vmatprep.subr.mxu0 0.0
    %998 = vmatpush2.msra.mxu0 0.0
    %999 = vmatprep.subr.mxu0 0.0
    %1000 = vmatpush2.msra.mxu0 0.0
    %1001 = vmatprep.subr.mxu0 0.0
    %1002 = vmatpush2.msra.mxu0 0.0
    %1003 = vmatprep.subr.mxu0 0.0
    %1004 = vmatpush2.msra.mxu0 0.0
    %1005 = vmatprep.subr.mxu0 0.0
    %1006 = vmatpush2.msra.mxu0 0.0
    %1007 = vmatprep.subr.mxu0 0.0
    %1008 = vmatpush2.msra.mxu0 0.0
    %1009 = vmatprep.subr.mxu0 0.0
    %1010 = vmatpush2.msra.mxu0 0.0
    %1011 = vmatprep.subr.mxu0 0.0
    %1012 = vmatpush2.msra.mxu0 0.0
    %1013 = vmatprep.subr.mxu0 0.0
    %1014 = vmatpush2.msra.mxu0 0.0
    %1015 = vmatprep.subr.mxu0 0.0
    %1016 = vmatpush2.msra.mxu0 0.0
    %1017 = vmatprep.subr.mxu0 0.0
    %1018 = vmatpush2.msra.mxu0 0.0
    %1019 = vmatprep.subr.mxu0 0.0
    %1020 = vmatpush2.msra.mxu0 0.0
    %1021 = vmatprep.subr.mxu0 0.0
    %1022 = vmatpush2.msra.mxu0 0.0
    %1023 = vmatprep.subr.mxu0 0.0
    %1024 = vmatpush2.msra.mxu0 0.0
    %1025 = vmatprep.subr.mxu0 0.0
    %1026 = vmatpush2.msra.mxu0 0.0
    %1027 = vmatprep.mubr.f32.mxu0 0.0
    %1028 = vmatmul.mubr.f32.gmra.mxu0 %v961
    %v1029 = vpop.f32.mrf.mxu0
    %v1030 = vadd.f32 0.0, %v1029
    %v1031 = vpop.f32.mrf.mxu0
    %1032 = vdwg.mxu0
    %v1033 = vmul.f32 %v957, %v723
    %v1034 = vmul.f32 %v1030, %v1033
    %v1035 = vsub.f32 %v725, %v1034
    %v1036 = vlaneseq
    %v1037 = vshrl.u32 %v1036, 7
    %v1038 = vsub.s32 0, %v1037
    %v1039 = vrot.slane %v1033, %v1038
    %v1040 = vmul.f32 %v719, %v1039
    %v1042 = vlaneseq
    %v1043 = vshrl.u32 %v1042, 7
    %v1044 = vsub.s32 0, %v1043
    %v1045 = vrot.slane %v1035, %v1044
    %v1047 = vadd.f32 %v1040, %v1045
    %v1048 = vadd.f32 %v221, %v1047
    %v1049 = vmax.f32 %v1048, 0.0
    %s1050 = scalar_lea.vmem %s4, 256
    %v1051 = vld [vmem:[%s1050] sm:$0xff]
    %v1052 = vld [vmem:[%s1050 + $0x8] sm:$0xff]
    %v1053 = vld [vmem:[%s1050 + $0x10] sm:$0xff]
    %v1054 = vld [vmem:[%s1050 + $0x18] sm:$0xff]
    %v1055 = vld [vmem:[%s1050 + $0x20] sm:$0xff]
    %v1056 = vld [vmem:[%s1050 + $0x28] sm:$0xff]
    %v1057 = vld [vmem:[%s1050 + $0x30] sm:$0xff]
    %v1058 = vld [vmem:[%s1050 + $0x38] sm:$0xff]
    %v1059 = vld [vmem:[%s1050 + $0x40] sm:$0xff]
    %v1060 = vld [vmem:[%s1050 + $0x48] sm:$0xff]
    %v1061 = vld [vmem:[%s1050 + $0x50] sm:$0xff]
    %v1062 = vld [vmem:[%s1050 + $0x58] sm:$0xff]
    %v1063 = vld [vmem:[%s1050 + $0x60] sm:$0xff]
    %v1064 = vld [vmem:[%s1050 + $0x68] sm:$0xff]
    %v1065 = vld [vmem:[%s1050 + $0x70] sm:$0xff]
    %v1066 = vld [vmem:[%s1050 + $0x78] sm:$0xff]
    %1067 = vmatprep.subr.mxu0 0.0
    %1068 = vmatpush1.msra.mxu0 %v1066
    %1069 = vmatprep.subr.mxu0 0.0
    %1070 = vmatpush1.msra.mxu0 %v1065
    %1071 = vmatprep.subr.mxu0 0.0
    %1072 = vmatpush1.msra.mxu0 %v1064
    %1073 = vmatprep.subr.mxu0 0.0
    %1074 = vmatpush1.msra.mxu0 %v1063
    %1075 = vmatprep.subr.mxu0 0.0
    %1076 = vmatpush1.msra.mxu0 %v1062
    %1077 = vmatprep.subr.mxu0 0.0
    %1078 = vmatpush1.msra.mxu0 %v1061
    %1079 = vmatprep.subr.mxu0 0.0
    %1080 = vmatpush1.msra.mxu0 %v1060
    %1081 = vmatprep.subr.mxu0 0.0
    %1082 = vmatpush1.msra.mxu0 %v1059
    %1083 = vmatprep.subr.mxu0 0.0
    %1084 = vmatpush1.msra.mxu0 %v1058
    %1085 = vmatprep.subr.mxu0 0.0
    %1086 = vmatpush1.msra.mxu0 %v1057
    %1087 = vmatprep.subr.mxu0 0.0
    %1088 = vmatpush1.msra.mxu0 %v1056
    %1089 = vmatprep.subr.mxu0 0.0
    %1090 = vmatpush1.msra.mxu0 %v1055
    %1091 = vmatprep.subr.mxu0 0.0
    %1092 = vmatpush1.msra.mxu0 %v1054
    %1093 = vmatprep.subr.mxu0 0.0
    %1094 = vmatpush1.msra.mxu0 %v1053
    %1095 = vmatprep.subr.mxu0 0.0
    %1096 = vmatpush1.msra.mxu0 %v1052
    %1097 = vmatprep.subr.mxu0 0.0
    %1098 = vmatpush1.msra.mxu0 %v1051
    %1099 = vmatprep.subr.mxu0 0.0
    %1100 = vmatpush2.msra.mxu0 0.0
    %1101 = vmatprep.subr.mxu0 0.0
    %1102 = vmatpush2.msra.mxu0 0.0
    %1103 = vmatprep.subr.mxu0 0.0
    %1104 = vmatpush2.msra.mxu0 0.0
    %1105 = vmatprep.subr.mxu0 0.0
    %1106 = vmatpush2.msra.mxu0 0.0
    %1107 = vmatprep.subr.mxu0 0.0
    %1108 = vmatpush2.msra.mxu0 0.0
    %1109 = vmatprep.subr.mxu0 0.0
    %1110 = vmatpush2.msra.mxu0 0.0
    %1111 = vmatprep.subr.mxu0 0.0
    %1112 = vmatpush2.msra.mxu0 0.0
    %1113 = vmatprep.subr.mxu0 0.0
    %1114 = vmatpush2.msra.mxu0 0.0
    %1115 = vmatprep.subr.mxu0 0.0
    %1116 = vmatpush2.msra.mxu0 0.0
    %1117 = vmatprep.subr.mxu0 0.0
    %1118 = vmatpush2.msra.mxu0 0.0
    %1119 = vmatprep.subr.mxu0 0.0
    %1120 = vmatpush2.msra.mxu0 0.0
    %1121 = vmatprep.subr.mxu0 0.0
    %1122 = vmatpush2.msra.mxu0 0.0
    %1123 = vmatprep.subr.mxu0 0.0
    %1124 = vmatpush2.msra.mxu0 0.0
    %1125 = vmatprep.subr.mxu0 0.0
    %1126 = vmatpush2.msra.mxu0 0.0
    %1127 = vmatprep.subr.mxu0 0.0
    %1128 = vmatpush2.msra.mxu0 0.0
    %1129 = vmatprep.subr.mxu0 0.0
    %1130 = vmatpush2.msra.mxu0 0.0
    %1131 = vmatprep.mubr.f32.mxu0 0.0
    %1132 = vmatmul.mubr.f32.gmra.mxu0 %v1049
    %v1133 = vpop.f32.mrf.mxu0
    %v1134 = vadd.f32 0.0, %v1133
    %v1135 = vpop.f32.mrf.mxu0
    %1136 = vdwg.mxu0
    %s1137 = scalar_lea.vmem [#allocation5], 2
    %v1138 = vld [vmem:[%s1137] sm:$0x1]
    %s1139 = scalar_lea.vmem [#allocation7], 2
    %v1140 = vld [vmem:[%s1139] sm:$0x1]
    %v1141 = vsel %vm310, %v1134, 0.0
    %v1142 = vrot.slane %v1141, 4
    %v1143 = vadd.f32 %v1141, %v1142
    %v1144 = vrot.slane %v1143, 2
    %v1145 = vadd.f32 %v1143, %v1144
    %v1146 = vrot.slane %v1145, 1
    %v1147 = vadd.f32 %v1145, %v1146
    %1148 = vmatprep.subr.mxu0 0.0
    %1149 = vmatpush1.msra.mxu0 %v137
    %1150 = vmatprep.subr.mxu0 0.0
    %1151 = vmatpush1.msra.mxu0 %v136
    %1152 = vmatprep.subr.mxu0 0.0
    %1153 = vmatpush1.msra.mxu0 %v135
    %1154 = vmatprep.subr.mxu0 0.0
    %1155 = vmatpush1.msra.mxu0 %v134
    %1156 = vmatprep.subr.mxu0 0.0
    %1157 = vmatpush1.msra.mxu0 %v133
    %1158 = vmatprep.subr.mxu0 0.0
    %1159 = vmatpush1.msra.mxu0 %v132
    %1160 = vmatprep.subr.mxu0 0.0
    %1161 = vmatpush1.msra.mxu0 %v131
    %1162 = vmatprep.subr.mxu0 0.0
    %1163 = vmatpush1.msra.mxu0 %v130
    %1164 = vmatprep.subr.mxu0 0.0
    %1165 = vmatpush1.msra.mxu0 %v129
    %1166 = vmatprep.subr.mxu0 0.0
    %1167 = vmatpush1.msra.mxu0 %v128
    %1168 = vmatprep.subr.mxu0 0.0
    %1169 = vmatpush1.msra.mxu0 %v127
    %1170 = vmatprep.subr.mxu0 0.0
    %1171 = vmatpush1.msra.mxu0 %v126
    %1172 = vmatprep.subr.mxu0 0.0
    %1173 = vmatpush1.msra.mxu0 %v125
    %1174 = vmatprep.subr.mxu0 0.0
    %1175 = vmatpush1.msra.mxu0 %v124
    %1176 = vmatprep.subr.mxu0 0.0
    %1177 = vmatpush1.msra.mxu0 %v123
    %1178 = vmatprep.subr.mxu0 0.0
    %1179 = vmatpush1.msra.mxu0 %v122
    %1180 = vmatprep.subr.mxu0 0.0
    %1181 = vmatpush2.msra.mxu0 0.0
    %1182 = vmatprep.subr.mxu0 0.0
    %1183 = vmatpush2.msra.mxu0 0.0
    %1184 = vmatprep.subr.mxu0 0.0
    %1185 = vmatpush2.msra.mxu0 0.0
    %1186 = vmatprep.subr.mxu0 0.0
    %1187 = vmatpush2.msra.mxu0 0.0
    %1188 = vmatprep.subr.mxu0 0.0
    %1189 = vmatpush2.msra.mxu0 0.0
    %1190 = vmatprep.subr.mxu0 0.0
    %1191 = vmatpush2.msra.mxu0 0.0
    %1192 = vmatprep.subr.mxu0 0.0
    %1193 = vmatpush2.msra.mxu0 0.0
    %1194 = vmatprep.subr.mxu0 0.0
    %1195 = vmatpush2.msra.mxu0 0.0
    %1196 = vmatprep.subr.mxu0 0.0
    %1197 = vmatpush2.msra.mxu0 0.0
    %1198 = vmatprep.subr.mxu0 0.0
    %1199 = vmatpush2.msra.mxu0 0.0
    %1200 = vmatprep.subr.mxu0 0.0
    %1201 = vmatpush2.msra.mxu0 0.0
    %1202 = vmatprep.subr.mxu0 0.0
    %1203 = vmatpush2.msra.mxu0 0.0
    %1204 = vmatprep.subr.mxu0 0.0
    %1205 = vmatpush2.msra.mxu0 0.0
    %1206 = vmatprep.subr.mxu0 0.0
    %1207 = vmatpush2.msra.mxu0 0.0
    %1208 = vmatprep.subr.mxu0 0.0
    %1209 = vmatpush2.msra.mxu0 0.0
    %1210 = vmatprep.subr.mxu0 0.0
    %1211 = vmatpush2.msra.mxu0 0.0
    %1212 = vmatprep.mubr.f32.mxu0 0.0
    %1213 = vmatmul.mubr.f32.gmra.mxu0 %v1147
    %v1214 = vpop.f32.mrf.mxu0
    %v1215 = vadd.f32 0.0, %v1214
    %v1216 = vpop.f32.mrf.mxu0
    %1217 = vdwg.mxu0
    %v1218 = vmul.f32 %v1134, %v1134
    %v1219 = vsel %vm310, %v1218, 0.0
    %v1220 = vrot.slane %v1219, 4
    %v1221 = vadd.f32 %v1219, %v1220
    %v1222 = vrot.slane %v1221, 2
    %v1223 = vadd.f32 %v1221, %v1222
    %v1224 = vrot.slane %v1223, 1
    %v1225 = vadd.f32 %v1223, %v1224
    %1226 = vmatprep.subr.mxu0 0.0
    %1227 = vmatpush1.msra.mxu0 %v137
    %1228 = vmatprep.subr.mxu0 0.0
    %1229 = vmatpush1.msra.mxu0 %v136
    %1230 = vmatprep.subr.mxu0 0.0
    %1231 = vmatpush1.msra.mxu0 %v135
    %1232 = vmatprep.subr.mxu0 0.0
    %1233 = vmatpush1.msra.mxu0 %v134
    %1234 = vmatprep.subr.mxu0 0.0
    %1235 = vmatpush1.msra.mxu0 %v133
    %1236 = vmatprep.subr.mxu0 0.0
    %1237 = vmatpush1.msra.mxu0 %v132
    %1238 = vmatprep.subr.mxu0 0.0
    %1239 = vmatpush1.msra.mxu0 %v131
    %1240 = vmatprep.subr.mxu0 0.0
    %1241 = vmatpush1.msra.mxu0 %v130
    %1242 = vmatprep.subr.mxu0 0.0
    %1243 = vmatpush1.msra.mxu0 %v129
    %1244 = vmatprep.subr.mxu0 0.0
    %1245 = vmatpush1.msra.mxu0 %v128
    %1246 = vmatprep.subr.mxu0 0.0
    %1247 = vmatpush1.msra.mxu0 %v127
    %1248 = vmatprep.subr.mxu0 0.0
    %1249 = vmatpush1.msra.mxu0 %v126
    %1250 = vmatprep.subr.mxu0 0.0
    %1251 = vmatpush1.msra.mxu0 %v125
    %1252 = vmatprep.subr.mxu0 0.0
    %1253 = vmatpush1.msra.mxu0 %v124
    %1254 = vmatprep.subr.mxu0 0.0
    %1255 = vmatpush1.msra.mxu0 %v123
    %1256 = vmatprep.subr.mxu0 0.0
    %1257 = vmatpush1.msra.mxu0 %v122
    %1258 = vmatprep.subr.mxu0 0.0
    %1259 = vmatpush2.msra.mxu0 0.0
    %1260 = vmatprep.subr.mxu0 0.0
    %1261 = vmatpush2.msra.mxu0 0.0
    %1262 = vmatprep.subr.mxu0 0.0
    %1263 = vmatpush2.msra.mxu0 0.0
    %1264 = vmatprep.subr.mxu0 0.0
    %1265 = vmatpush2.msra.mxu0 0.0
    %1266 = vmatprep.subr.mxu0 0.0
    %1267 = vmatpush2.msra.mxu0 0.0
    %1268 = vmatprep.subr.mxu0 0.0
    %1269 = vmatpush2.msra.mxu0 0.0
    %1270 = vmatprep.subr.mxu0 0.0
    %1271 = vmatpush2.msra.mxu0 0.0
    %1272 = vmatprep.subr.mxu0 0.0
    %1273 = vmatpush2.msra.mxu0 0.0
    %1274 = vmatprep.subr.mxu0 0.0
    %1275 = vmatpush2.msra.mxu0 0.0
    %1276 = vmatprep.subr.mxu0 0.0
    %1277 = vmatpush2.msra.mxu0 0.0
    %1278 = vmatprep.subr.mxu0 0.0
    %1279 = vmatpush2.msra.mxu0 0.0
    %1280 = vmatprep.subr.mxu0 0.0
    %1281 = vmatpush2.msra.mxu0 0.0
    %1282 = vmatprep.subr.mxu0 0.0
    %1283 = vmatpush2.msra.mxu0 0.0
    %1284 = vmatprep.subr.mxu0 0.0
    %1285 = vmatpush2.msra.mxu0 0.0
    %1286 = vmatprep.subr.mxu0 0.0
    %1287 = vmatpush2.msra.mxu0 0.0
    %1288 = vmatprep.subr.mxu0 0.0
    %1289 = vmatpush2.msra.mxu0 0.0
    %1290 = vmatprep.mubr.f32.mxu0 0.0
    %1291 = vmatmul.mubr.f32.gmra.mxu0 %v1225
    %v1292 = vpop.f32.mrf.mxu0
    %v1293 = vadd.f32 0.0, %v1292
    %v1294 = vpop.f32.mrf.mxu0
    %1295 = vdwg.mxu0
    %v1296 = vmul.f32 %v1215, 0.03125
    %v1297 = vmul.f32 %v1293, 0.03125
    %v1298 = vmul.f32 %v1296, %v1296
    %v1299 = vsub.f32 %v1297, %v1298
    %v1300 = vadd.f32 %v1299, 1e-05
    %v1301 = vrsqrt.pop %v1300
    %v1303 = vsel %vm472, %v1301, 0
    %1305 = vmatprep.subr.mxu0 0.0
    %1306 = vmatpush1.msra.mxu0 0.0
    %1307 = vmatprep.subr.mxu0 0.0
    %1308 = vmatpush1.msra.mxu0 0.0
    %1309 = vmatprep.subr.mxu0 0.0
    %1310 = vmatpush1.msra.mxu0 0.0
    %1311 = vmatprep.subr.mxu0 0.0
    %1312 = vmatpush1.msra.mxu0 0.0
    %1313 = vmatprep.subr.mxu0 0.0
    %1314 = vmatpush1.msra.mxu0 0.0
    %1315 = vmatprep.subr.mxu0 0.0
    %1316 = vmatpush1.msra.mxu0 0.0
    %1317 = vmatprep.subr.mxu0 0.0
    %1318 = vmatpush1.msra.mxu0 0.0
    %1319 = vmatprep.subr.mxu0 0.0
    %1320 = vmatpush1.msra.mxu0 0.0
    %1321 = vmatprep.subr.mxu0 0.0
    %1322 = vmatpush1.msra.mxu0 0.0
    %1323 = vmatprep.subr.mxu0 0.0
    %1324 = vmatpush1.msra.mxu0 0.0
    %1325 = vmatprep.subr.mxu0 0.0
    %1326 = vmatpush1.msra.mxu0 0.0
    %1327 = vmatprep.subr.mxu0 0.0
    %1328 = vmatpush1.msra.mxu0 0.0
    %1329 = vmatprep.subr.mxu0 0.0
    %1330 = vmatpush1.msra.mxu0 0.0
    %1331 = vmatprep.subr.mxu0 0.0
    %1332 = vmatpush1.msra.mxu0 0.0
    %1333 = vmatprep.subr.mxu0 0.0
    %1334 = vmatpush1.msra.mxu0 0.0
    %1335 = vmatprep.subr.mxu0 0.0
    %1336 = vmatpush1.msra.mxu0 %v138
    %1337 = vmatprep.subr.mxu0 0.0
    %1338 = vmatpush2.msra.mxu0 0.0
    %1339 = vmatprep.subr.mxu0 0.0
    %1340 = vmatpush2.msra.mxu0 0.0
    %1341 = vmatprep.subr.mxu0 0.0
    %1342 = vmatpush2.msra.mxu0 0.0
    %1343 = vmatprep.subr.mxu0 0.0
    %1344 = vmatpush2.msra.mxu0 0.0
    %1345 = vmatprep.subr.mxu0 0.0
    %1346 = vmatpush2.msra.mxu0 0.0
    %1347 = vmatprep.subr.mxu0 0.0
    %1348 = vmatpush2.msra.mxu0 0.0
    %1349 = vmatprep.subr.mxu0 0.0
    %1350 = vmatpush2.msra.mxu0 0.0
    %1351 = vmatprep.subr.mxu0 0.0
    %1352 = vmatpush2.msra.mxu0 0.0
    %1353 = vmatprep.subr.mxu0 0.0
    %1354 = vmatpush2.msra.mxu0 0.0
    %1355 = vmatprep.subr.mxu0 0.0
    %1356 = vmatpush2.msra.mxu0 0.0
    %1357 = vmatprep.subr.mxu0 0.0
    %1358 = vmatpush2.msra.mxu0 0.0
    %1359 = vmatprep.subr.mxu0 0.0
    %1360 = vmatpush2.msra.mxu0 0.0
    %1361 = vmatprep.subr.mxu0 0.0
    %1362 = vmatpush2.msra.mxu0 0.0
    %1363 = vmatprep.subr.mxu0 0.0
    %1364 = vmatpush2.msra.mxu0 0.0
    %1365 = vmatprep.subr.mxu0 0.0
    %1366 = vmatpush2.msra.mxu0 0.0
    %1367 = vmatprep.subr.mxu0 0.0
    %1368 = vmatpush2.msra.mxu0 0.0
    %1369 = vmatprep.mubr.f32.mxu0 0.0
    %1370 = vmatmul.mubr.f32.gmra.mxu0 %v1303
    %v1371 = vpop.f32.mrf.mxu0
    %v1372 = vadd.f32 0.0, %v1371
    %v1373 = vpop.f32.mrf.mxu0
    %1374 = vdwg.mxu0
    %v1376 = vsel %vm472, %v1296, 0
    %1378 = vmatprep.subr.mxu0 0.0
    %1379 = vmatpush1.msra.mxu0 0.0
    %1380 = vmatprep.subr.mxu0 0.0
    %1381 = vmatpush1.msra.mxu0 0.0
    %1382 = vmatprep.subr.mxu0 0.0
    %1383 = vmatpush1.msra.mxu0 0.0
    %1384 = vmatprep.subr.mxu0 0.0
    %1385 = vmatpush1.msra.mxu0 0.0
    %1386 = vmatprep.subr.mxu0 0.0
    %1387 = vmatpush1.msra.mxu0 0.0
    %1388 = vmatprep.subr.mxu0 0.0
    %1389 = vmatpush1.msra.mxu0 0.0
    %1390 = vmatprep.subr.mxu0 0.0
    %1391 = vmatpush1.msra.mxu0 0.0
    %1392 = vmatprep.subr.mxu0 0.0
    %1393 = vmatpush1.msra.mxu0 0.0
    %1394 = vmatprep.subr.mxu0 0.0
    %1395 = vmatpush1.msra.mxu0 0.0
    %1396 = vmatprep.subr.mxu0 0.0
    %1397 = vmatpush1.msra.mxu0 0.0
    %1398 = vmatprep.subr.mxu0 0.0
    %1399 = vmatpush1.msra.mxu0 0.0
    %1400 = vmatprep.subr.mxu0 0.0
    %1401 = vmatpush1.msra.mxu0 0.0
    %1402 = vmatprep.subr.mxu0 0.0
    %1403 = vmatpush1.msra.mxu0 0.0
    %1404 = vmatprep.subr.mxu0 0.0
    %1405 = vmatpush1.msra.mxu0 0.0
    %1406 = vmatprep.subr.mxu0 0.0
    %1407 = vmatpush1.msra.mxu0 0.0
    %1408 = vmatprep.subr.mxu0 0.0
    %1409 = vmatpush1.msra.mxu0 %v138
    %1410 = vmatprep.subr.mxu0 0.0
    %1411 = vmatpush2.msra.mxu0 0.0
    %1412 = vmatprep.subr.mxu0 0.0
    %1413 = vmatpush2.msra.mxu0 0.0
    %1414 = vmatprep.subr.mxu0 0.0
    %1415 = vmatpush2.msra.mxu0 0.0
    %1416 = vmatprep.subr.mxu0 0.0
    %1417 = vmatpush2.msra.mxu0 0.0
    %1418 = vmatprep.subr.mxu0 0.0
    %1419 = vmatpush2.msra.mxu0 0.0
    %1420 = vmatprep.subr.mxu0 0.0
    %1421 = vmatpush2.msra.mxu0 0.0
    %1422 = vmatprep.subr.mxu0 0.0
    %1423 = vmatpush2.msra.mxu0 0.0
    %1424 = vmatprep.subr.mxu0 0.0
    %1425 = vmatpush2.msra.mxu0 0.0
    %1426 = vmatprep.subr.mxu0 0.0
    %1427 = vmatpush2.msra.mxu0 0.0
    %1428 = vmatprep.subr.mxu0 0.0
    %1429 = vmatpush2.msra.mxu0 0.0
    %1430 = vmatprep.subr.mxu0 0.0
    %1431 = vmatpush2.msra.mxu0 0.0
    %1432 = vmatprep.subr.mxu0 0.0
    %1433 = vmatpush2.msra.mxu0 0.0
    %1434 = vmatprep.subr.mxu0 0.0
    %1435 = vmatpush2.msra.mxu0 0.0
    %1436 = vmatprep.subr.mxu0 0.0
    %1437 = vmatpush2.msra.mxu0 0.0
    %1438 = vmatprep.subr.mxu0 0.0
    %1439 = vmatpush2.msra.mxu0 0.0
    %1440 = vmatprep.subr.mxu0 0.0
    %1441 = vmatpush2.msra.mxu0 0.0
    %1442 = vmatprep.mubr.f32.mxu0 0.0
    %1443 = vmatmul.mubr.f32.gmra.mxu0 %v1376
    %v1444 = vpop.f32.mrf.mxu0
    %v1445 = vadd.f32 0.0, %v1444
    %v1446 = vpop.f32.mrf.mxu0
    %1447 = vdwg.mxu0
    %v1448 = vmul.f32 %v1372, %v1138
    %v1449 = vmul.f32 %v1445, %v1448
    %v1450 = vsub.f32 %v1140, %v1449
    %v1451 = vlaneseq
    %v1452 = vshrl.u32 %v1451, 7
    %v1453 = vsub.s32 0, %v1452
    %v1454 = vrot.slane %v1448, %v1453
    %v1455 = vmul.f32 %v1134, %v1454
    %v1457 = vlaneseq
    %v1458 = vshrl.u32 %v1457, 7
    %v1459 = vsub.s32 0, %v1458
    %v1460 = vrot.slane %v1450, %v1459
    %v1462 = vadd.f32 %v1455, %v1460
    %v1463 = vmax.f32 %v1462, 0.0
    %s1464 = scalar_lea.vmem %s4, 384
    %v1465 = vld [vmem:[%s1464] sm:$0xff]
    %v1466 = vld [vmem:[%s1464 + $0x8] sm:$0xff]
    %v1467 = vld [vmem:[%s1464 + $0x10] sm:$0xff]
    %v1468 = vld [vmem:[%s1464 + $0x18] sm:$0xff]
    %v1469 = vld [vmem:[%s1464 + $0x20] sm:$0xff]
    %v1470 = vld [vmem:[%s1464 + $0x28] sm:$0xff]
    %v1471 = vld [vmem:[%s1464 + $0x30] sm:$0xff]
    %v1472 = vld [vmem:[%s1464 + $0x38] sm:$0xff]
    %v1473 = vld [vmem:[%s1464 + $0x40] sm:$0xff]
    %v1474 = vld [vmem:[%s1464 + $0x48] sm:$0xff]
    %v1475 = vld [vmem:[%s1464 + $0x50] sm:$0xff]
    %v1476 = vld [vmem:[%s1464 + $0x58] sm:$0xff]
    %v1477 = vld [vmem:[%s1464 + $0x60] sm:$0xff]
    %v1478 = vld [vmem:[%s1464 + $0x68] sm:$0xff]
    %v1479 = vld [vmem:[%s1464 + $0x70] sm:$0xff]
    %v1480 = vld [vmem:[%s1464 + $0x78] sm:$0xff]
    %1481 = vmatprep.subr.mxu0 0.0
    %1482 = vmatpush1.msra.mxu0 %v1480
    %1483 = vmatprep.subr.mxu0 0.0
    %1484 = vmatpush1.msra.mxu0 %v1479
    %1485 = vmatprep.subr.mxu0 0.0
    %1486 = vmatpush1.msra.mxu0 %v1478
    %1487 = vmatprep.subr.mxu0 0.0
    %1488 = vmatpush1.msra.mxu0 %v1477
    %1489 = vmatprep.subr.mxu0 0.0
    %1490 = vmatpush1.msra.mxu0 %v1476
    %1491 = vmatprep.subr.mxu0 0.0
    %1492 = vmatpush1.msra.mxu0 %v1475
    %1493 = vmatprep.subr.mxu0 0.0
    %1494 = vmatpush1.msra.mxu0 %v1474
    %1495 = vmatprep.subr.mxu0 0.0
    %1496 = vmatpush1.msra.mxu0 %v1473
    %1497 = vmatprep.subr.mxu0 0.0
    %1498 = vmatpush1.msra.mxu0 %v1472
    %1499 = vmatprep.subr.mxu0 0.0
    %1500 = vmatpush1.msra.mxu0 %v1471
    %1501 = vmatprep.subr.mxu0 0.0
    %1502 = vmatpush1.msra.mxu0 %v1470
    %1503 = vmatprep.subr.mxu0 0.0
    %1504 = vmatpush1.msra.mxu0 %v1469
    %1505 = vmatprep.subr.mxu0 0.0
    %1506 = vmatpush1.msra.mxu0 %v1468
    %1507 = vmatprep.subr.mxu0 0.0
    %1508 = vmatpush1.msra.mxu0 %v1467
    %1509 = vmatprep.subr.mxu0 0.0
    %1510 = vmatpush1.msra.mxu0 %v1466
    %1511 = vmatprep.subr.mxu0 0.0
    %1512 = vmatpush1.msra.mxu0 %v1465
    %1513 = vmatprep.subr.mxu0 0.0
    %1514 = vmatpush2.msra.mxu0 0.0
    %1515 = vmatprep.subr.mxu0 0.0
    %1516 = vmatpush2.msra.mxu0 0.0
    %1517 = vmatprep.subr.mxu0 0.0
    %1518 = vmatpush2.msra.mxu0 0.0
    %1519 = vmatprep.subr.mxu0 0.0
    %1520 = vmatpush2.msra.mxu0 0.0
    %1521 = vmatprep.subr.mxu0 0.0
    %1522 = vmatpush2.msra.mxu0 0.0
    %1523 = vmatprep.subr.mxu0 0.0
    %1524 = vmatpush2.msra.mxu0 0.0
    %1525 = vmatprep.subr.mxu0 0.0
    %1526 = vmatpush2.msra.mxu0 0.0
    %1527 = vmatprep.subr.mxu0 0.0
    %1528 = vmatpush2.msra.mxu0 0.0
    %1529 = vmatprep.subr.mxu0 0.0
    %1530 = vmatpush2.msra.mxu0 0.0
    %1531 = vmatprep.subr.mxu0 0.0
    %1532 = vmatpush2.msra.mxu0 0.0
    %1533 = vmatprep.subr.mxu0 0.0
    %1534 = vmatpush2.msra.mxu0 0.0
    %1535 = vmatprep.subr.mxu0 0.0
    %1536 = vmatpush2.msra.mxu0 0.0
    %1537 = vmatprep.subr.mxu0 0.0
    %1538 = vmatpush2.msra.mxu0 0.0
    %1539 = vmatprep.subr.mxu0 0.0
    %1540 = vmatpush2.msra.mxu0 0.0
    %1541 = vmatprep.subr.mxu0 0.0
    %1542 = vmatpush2.msra.mxu0 0.0
    %1543 = vmatprep.subr.mxu0 0.0
    %1544 = vmatpush2.msra.mxu0 0.0
    %1545 = vmatprep.mubr.f32.mxu0 0.0
    %1546 = vmatmul.mubr.f32.gmra.mxu0 %v1463
    %v1547 = vpop.f32.mrf.mxu0
    %v1548 = vadd.f32 0.0, %v1547
    %v1549 = vpop.f32.mrf.mxu0
    %1550 = vdwg.mxu0
    %s1551 = scalar_lea.vmem [#allocation5], 3
    %v1552 = vld [vmem:[%s1551] sm:$0x1]
    %s1553 = scalar_lea.vmem [#allocation7], 3
    %v1554 = vld [vmem:[%s1553] sm:$0x1]
    %v1555 = vsel %vm310, %v1548, 0.0
    %v1556 = vrot.slane %v1555, 4
    %v1557 = vadd.f32 %v1555, %v1556
    %v1558 = vrot.slane %v1557, 2
    %v1559 = vadd.f32 %v1557, %v1558
    %v1560 = vrot.slane %v1559, 1
    %v1561 = vadd.f32 %v1559, %v1560
    %1562 = vmatprep.subr.mxu0 0.0
    %1563 = vmatpush1.msra.mxu0 %v137
    %1564 = vmatprep.subr.mxu0 0.0
    %1565 = vmatpush1.msra.mxu0 %v136
    %1566 = vmatprep.subr.mxu0 0.0
    %1567 = vmatpush1.msra.mxu0 %v135
    %1568 = vmatprep.subr.mxu0 0.0
    %1569 = vmatpush1.msra.mxu0 %v134
    %1570 = vmatprep.subr.mxu0 0.0
    %1571 = vmatpush1.msra.mxu0 %v133
    %1572 = vmatprep.subr.mxu0 0.0
    %1573 = vmatpush1.msra.mxu0 %v132
    %1574 = vmatprep.subr.mxu0 0.0
    %1575 = vmatpush1.msra.mxu0 %v131
    %1576 = vmatprep.subr.mxu0 0.0
    %1577 = vmatpush1.msra.mxu0 %v130
    %1578 = vmatprep.subr.mxu0 0.0
    %1579 = vmatpush1.msra.mxu0 %v129
    %1580 = vmatprep.subr.mxu0 0.0
    %1581 = vmatpush1.msra.mxu0 %v128
    %1582 = vmatprep.subr.mxu0 0.0
    %1583 = vmatpush1.msra.mxu0 %v127
    %1584 = vmatprep.subr.mxu0 0.0
    %1585 = vmatpush1.msra.mxu0 %v126
    %1586 = vmatprep.subr.mxu0 0.0
    %1587 = vmatpush1.msra.mxu0 %v125
    %1588 = vmatprep.subr.mxu0 0.0
    %1589 = vmatpush1.msra.mxu0 %v124
    %1590 = vmatprep.subr.mxu0 0.0
    %1591 = vmatpush1.msra.mxu0 %v123
    %1592 = vmatprep.subr.mxu0 0.0
    %1593 = vmatpush1.msra.mxu0 %v122
    %1594 = vmatprep.subr.mxu0 0.0
    %1595 = vmatpush2.msra.mxu0 0.0
    %1596 = vmatprep.subr.mxu0 0.0
    %1597 = vmatpush2.msra.mxu0 0.0
    %1598 = vmatprep.subr.mxu0 0.0
    %1599 = vmatpush2.msra.mxu0 0.0
    %1600 = vmatprep.subr.mxu0 0.0
    %1601 = vmatpush2.msra.mxu0 0.0
    %1602 = vmatprep.subr.mxu0 0.0
    %1603 = vmatpush2.msra.mxu0 0.0
    %1604 = vmatprep.subr.mxu0 0.0
    %1605 = vmatpush2.msra.mxu0 0.0
    %1606 = vmatprep.subr.mxu0 0.0
    %1607 = vmatpush2.msra.mxu0 0.0
    %1608 = vmatprep.subr.mxu0 0.0
    %1609 = vmatpush2.msra.mxu0 0.0
    %1610 = vmatprep.subr.mxu0 0.0
    %1611 = vmatpush2.msra.mxu0 0.0
    %1612 = vmatprep.subr.mxu0 0.0
    %1613 = vmatpush2.msra.mxu0 0.0
    %1614 = vmatprep.subr.mxu0 0.0
    %1615 = vmatpush2.msra.mxu0 0.0
    %1616 = vmatprep.subr.mxu0 0.0
    %1617 = vmatpush2.msra.mxu0 0.0
    %1618 = vmatprep.subr.mxu0 0.0
    %1619 = vmatpush2.msra.mxu0 0.0
    %1620 = vmatprep.subr.mxu0 0.0
    %1621 = vmatpush2.msra.mxu0 0.0
    %1622 = vmatprep.subr.mxu0 0.0
    %1623 = vmatpush2.msra.mxu0 0.0
    %1624 = vmatprep.subr.mxu0 0.0
    %1625 = vmatpush2.msra.mxu0 0.0
    %1626 = vmatprep.mubr.f32.mxu0 0.0
    %1627 = vmatmul.mubr.f32.gmra.mxu0 %v1561
    %v1628 = vpop.f32.mrf.mxu0
    %v1629 = vadd.f32 0.0, %v1628
    %v1630 = vpop.f32.mrf.mxu0
    %1631 = vdwg.mxu0
    %v1632 = vmul.f32 %v1548, %v1548
    %v1633 = vsel %vm310, %v1632, 0.0
    %v1634 = vrot.slane %v1633, 4
    %v1635 = vadd.f32 %v1633, %v1634
    %v1636 = vrot.slane %v1635, 2
    %v1637 = vadd.f32 %v1635, %v1636
    %v1638 = vrot.slane %v1637, 1
    %v1639 = vadd.f32 %v1637, %v1638
    %1640 = vmatprep.subr.mxu0 0.0
    %1641 = vmatpush1.msra.mxu0 %v137
    %1642 = vmatprep.subr.mxu0 0.0
    %1643 = vmatpush1.msra.mxu0 %v136
    %1644 = vmatprep.subr.mxu0 0.0
    %1645 = vmatpush1.msra.mxu0 %v135
    %1646 = vmatprep.subr.mxu0 0.0
    %1647 = vmatpush1.msra.mxu0 %v134
    %1648 = vmatprep.subr.mxu0 0.0
    %1649 = vmatpush1.msra.mxu0 %v133
    %1650 = vmatprep.subr.mxu0 0.0
    %1651 = vmatpush1.msra.mxu0 %v132
    %1652 = vmatprep.subr.mxu0 0.0
    %1653 = vmatpush1.msra.mxu0 %v131
    %1654 = vmatprep.subr.mxu0 0.0
    %1655 = vmatpush1.msra.mxu0 %v130
    %1656 = vmatprep.subr.mxu0 0.0
    %1657 = vmatpush1.msra.mxu0 %v129
    %1658 = vmatprep.subr.mxu0 0.0
    %1659 = vmatpush1.msra.mxu0 %v128
    %1660 = vmatprep.subr.mxu0 0.0
    %1661 = vmatpush1.msra.mxu0 %v127
    %1662 = vmatprep.subr.mxu0 0.0
    %1663 = vmatpush1.msra.mxu0 %v126
    %1664 = vmatprep.subr.mxu0 0.0
    %1665 = vmatpush1.msra.mxu0 %v125
    %1666 = vmatprep.subr.mxu0 0.0
    %1667 = vmatpush1.msra.mxu0 %v124
    %1668 = vmatprep.subr.mxu0 0.0
    %1669 = vmatpush1.msra.mxu0 %v123
    %1670 = vmatprep.subr.mxu0 0.0
    %1671 = vmatpush1.msra.mxu0 %v122
    %1672 = vmatprep.subr.mxu0 0.0
    %1673 = vmatpush2.msra.mxu0 0.0
    %1674 = vmatprep.subr.mxu0 0.0
    %1675 = vmatpush2.msra.mxu0 0.0
    %1676 = vmatprep.subr.mxu0 0.0
    %1677 = vmatpush2.msra.mxu0 0.0
    %1678 = vmatprep.subr.mxu0 0.0
    %1679 = vmatpush2.msra.mxu0 0.0
    %1680 = vmatprep.subr.mxu0 0.0
    %1681 = vmatpush2.msra.mxu0 0.0
    %1682 = vmatprep.subr.mxu0 0.0
    %1683 = vmatpush2.msra.mxu0 0.0
    %1684 = vmatprep.subr.mxu0 0.0
    %1685 = vmatpush2.msra.mxu0 0.0
    %1686 = vmatprep.subr.mxu0 0.0
    %1687 = vmatpush2.msra.mxu0 0.0
    %1688 = vmatprep.subr.mxu0 0.0
    %1689 = vmatpush2.msra.mxu0 0.0
    %1690 = vmatprep.subr.mxu0 0.0
    %1691 = vmatpush2.msra.mxu0 0.0
    %1692 = vmatprep.subr.mxu0 0.0
    %1693 = vmatpush2.msra.mxu0 0.0
    %1694 = vmatprep.subr.mxu0 0.0
    %1695 = vmatpush2.msra.mxu0 0.0
    %1696 = vmatprep.subr.mxu0 0.0
    %1697 = vmatpush2.msra.mxu0 0.0
    %1698 = vmatprep.subr.mxu0 0.0
    %1699 = vmatpush2.msra.mxu0 0.0
    %1700 = vmatprep.subr.mxu0 0.0
    %1701 = vmatpush2.msra.mxu0 0.0
    %1702 = vmatprep.subr.mxu0 0.0
    %1703 = vmatpush2.msra.mxu0 0.0
    %1704 = vmatprep.mubr.f32.mxu0 0.0
    %1705 = vmatmul.mubr.f32.gmra.mxu0 %v1639
    %v1706 = vpop.f32.mrf.mxu0
    %v1707 = vadd.f32 0.0, %v1706
    %v1708 = vpop.f32.mrf.mxu0
    %1709 = vdwg.mxu0
    %v1710 = vmul.f32 %v1629, 0.03125
    %v1711 = vmul.f32 %v1707, 0.03125
    %v1712 = vmul.f32 %v1710, %v1710
    %v1713 = vsub.f32 %v1711, %v1712
    %v1714 = vadd.f32 %v1713, 1e-05
    %v1715 = vrsqrt.pop %v1714
    %v1717 = vsel %vm472, %v1715, 0
    %1719 = vmatprep.subr.mxu0 0.0
    %1720 = vmatpush1.msra.mxu0 0.0
    %1721 = vmatprep.subr.mxu0 0.0
    %1722 = vmatpush1.msra.mxu0 0.0
    %1723 = vmatprep.subr.mxu0 0.0
    %1724 = vmatpush1.msra.mxu0 0.0
    %1725 = vmatprep.subr.mxu0 0.0
    %1726 = vmatpush1.msra.mxu0 0.0
    %1727 = vmatprep.subr.mxu0 0.0
    %1728 = vmatpush1.msra.mxu0 0.0
    %1729 = vmatprep.subr.mxu0 0.0
    %1730 = vmatpush1.msra.mxu0 0.0
    %1731 = vmatprep.subr.mxu0 0.0
    %1732 = vmatpush1.msra.mxu0 0.0
    %1733 = vmatprep.subr.mxu0 0.0
    %1734 = vmatpush1.msra.mxu0 0.0
    %1735 = vmatprep.subr.mxu0 0.0
    %1736 = vmatpush1.msra.mxu0 0.0
    %1737 = vmatprep.subr.mxu0 0.0
    %1738 = vmatpush1.msra.mxu0 0.0
    %1739 = vmatprep.subr.mxu0 0.0
    %1740 = vmatpush1.msra.mxu0 0.0
    %1741 = vmatprep.subr.mxu0 0.0
    %1742 = vmatpush1.msra.mxu0 0.0
    %1743 = vmatprep.subr.mxu0 0.0
    %1744 = vmatpush1.msra.mxu0 0.0
    %1745 = vmatprep.subr.mxu0 0.0
    %1746 = vmatpush1.msra.mxu0 0.0
    %1747 = vmatprep.subr.mxu0 0.0
    %1748 = vmatpush1.msra.mxu0 0.0
    %1749 = vmatprep.subr.mxu0 0.0
    %1750 = vmatpush1.msra.mxu0 %v138
    %1751 = vmatprep.subr.mxu0 0.0
    %1752 = vmatpush2.msra.mxu0 0.0
    %1753 = vmatprep.subr.mxu0 0.0
    %1754 = vmatpush2.msra.mxu0 0.0
    %1755 = vmatprep.subr.mxu0 0.0
    %1756 = vmatpush2.msra.mxu0 0.0
    %1757 = vmatprep.subr.mxu0 0.0
    %1758 = vmatpush2.msra.mxu0 0.0
    %1759 = vmatprep.subr.mxu0 0.0
    %1760 = vmatpush2.msra.mxu0 0.0
    %1761 = vmatprep.subr.mxu0 0.0
    %1762 = vmatpush2.msra.mxu0 0.0
    %1763 = vmatprep.subr.mxu0 0.0
    %1764 = vmatpush2.msra.mxu0 0.0
    %1765 = vmatprep.subr.mxu0 0.0
    %1766 = vmatpush2.msra.mxu0 0.0
    %1767 = vmatprep.subr.mxu0 0.0
    %1768 = vmatpush2.msra.mxu0 0.0
    %1769 = vmatprep.subr.mxu0 0.0
    %1770 = vmatpush2.msra.mxu0 0.0
    %1771 = vmatprep.subr.mxu0 0.0
    %1772 = vmatpush2.msra.mxu0 0.0
    %1773 = vmatprep.subr.mxu0 0.0
    %1774 = vmatpush2.msra.mxu0 0.0
    %1775 = vmatprep.subr.mxu0 0.0
    %1776 = vmatpush2.msra.mxu0 0.0
    %1777 = vmatprep.subr.mxu0 0.0
    %1778 = vmatpush2.msra.mxu0 0.0
    %1779 = vmatprep.subr.mxu0 0.0
    %1780 = vmatpush2.msra.mxu0 0.0
    %1781 = vmatprep.subr.mxu0 0.0
    %1782 = vmatpush2.msra.mxu0 0.0
    %1783 = vmatprep.mubr.f32.mxu0 0.0
    %1784 = vmatmul.mubr.f32.gmra.mxu0 %v1717
    %v1785 = vpop.f32.mrf.mxu0
    %v1786 = vadd.f32 0.0, %v1785
    %v1787 = vpop.f32.mrf.mxu0
    %1788 = vdwg.mxu0
    %v1790 = vsel %vm472, %v1710, 0
    %1792 = vmatprep.subr.mxu0 0.0
    %1793 = vmatpush1.msra.mxu0 0.0
    %1794 = vmatprep.subr.mxu0 0.0
    %1795 = vmatpush1.msra.mxu0 0.0
    %1796 = vmatprep.subr.mxu0 0.0
    %1797 = vmatpush1.msra.mxu0 0.0
    %1798 = vmatprep.subr.mxu0 0.0
    %1799 = vmatpush1.msra.mxu0 0.0
    %1800 = vmatprep.subr.mxu0 0.0
    %1801 = vmatpush1.msra.mxu0 0.0
    %1802 = vmatprep.subr.mxu0 0.0
    %1803 = vmatpush1.msra.mxu0 0.0
    %1804 = vmatprep.subr.mxu0 0.0
    %1805 = vmatpush1.msra.mxu0 0.0
    %1806 = vmatprep.subr.mxu0 0.0
    %1807 = vmatpush1.msra.mxu0 0.0
    %1808 = vmatprep.subr.mxu0 0.0
    %1809 = vmatpush1.msra.mxu0 0.0
    %1810 = vmatprep.subr.mxu0 0.0
    %1811 = vmatpush1.msra.mxu0 0.0
    %1812 = vmatprep.subr.mxu0 0.0
    %1813 = vmatpush1.msra.mxu0 0.0
    %1814 = vmatprep.subr.mxu0 0.0
    %1815 = vmatpush1.msra.mxu0 0.0
    %1816 = vmatprep.subr.mxu0 0.0
    %1817 = vmatpush1.msra.mxu0 0.0
    %1818 = vmatprep.subr.mxu0 0.0
    %1819 = vmatpush1.msra.mxu0 0.0
    %1820 = vmatprep.subr.mxu0 0.0
    %1821 = vmatpush1.msra.mxu0 0.0
    %1822 = vmatprep.subr.mxu0 0.0
    %1823 = vmatpush1.msra.mxu0 %v138
    %1824 = vmatprep.subr.mxu0 0.0
    %1825 = vmatpush2.msra.mxu0 0.0
    %1826 = vmatprep.subr.mxu0 0.0
    %1827 = vmatpush2.msra.mxu0 0.0
    %1828 = vmatprep.subr.mxu0 0.0
    %1829 = vmatpush2.msra.mxu0 0.0
    %1830 = vmatprep.subr.mxu0 0.0
    %1831 = vmatpush2.msra.mxu0 0.0
    %1832 = vmatprep.subr.mxu0 0.0
    %1833 = vmatpush2.msra.mxu0 0.0
    %1834 = vmatprep.subr.mxu0 0.0
    %1835 = vmatpush2.msra.mxu0 0.0
    %1836 = vmatprep.subr.mxu0 0.0
    %1837 = vmatpush2.msra.mxu0 0.0
    %1838 = vmatprep.subr.mxu0 0.0
    %1839 = vmatpush2.msra.mxu0 0.0
    %1840 = vmatprep.subr.mxu0 0.0
    %1841 = vmatpush2.msra.mxu0 0.0
    %1842 = vmatprep.subr.mxu0 0.0
    %1843 = vmatpush2.msra.mxu0 0.0
    %1844 = vmatprep.subr.mxu0 0.0
    %1845 = vmatpush2.msra.mxu0 0.0
    %1846 = vmatprep.subr.mxu0 0.0
    %1847 = vmatpush2.msra.mxu0 0.0
    %1848 = vmatprep.subr.mxu0 0.0
    %1849 = vmatpush2.msra.mxu0 0.0
    %1850 = vmatprep.subr.mxu0 0.0
    %1851 = vmatpush2.msra.mxu0 0.0
    %1852 = vmatprep.subr.mxu0 0.0
    %1853 = vmatpush2.msra.mxu0 0.0
    %1854 = vmatprep.subr.mxu0 0.0
    %1855 = vmatpush2.msra.mxu0 0.0
    %1856 = vmatprep.mubr.f32.mxu0 0.0
    %1857 = vmatmul.mubr.f32.gmra.mxu0 %v1790
    %v1858 = vpop.f32.mrf.mxu0
    %v1859 = vadd.f32 0.0, %v1858
    %v1860 = vpop.f32.mrf.mxu0
    %1861 = vdwg.mxu0
    %v1862 = vmul.f32 %v1786, %v1552
    %v1863 = vmul.f32 %v1859, %v1862
    %v1864 = vsub.f32 %v1554, %v1863
    %v1865 = vlaneseq
    %v1866 = vshrl.u32 %v1865, 7
    %v1867 = vsub.s32 0, %v1866
    %v1868 = vrot.slane %v1862, %v1867
    %v1869 = vmul.f32 %v1548, %v1868
    %v1871 = vlaneseq
    %v1872 = vshrl.u32 %v1871, 7
    %v1873 = vsub.s32 0, %v1872
    %v1874 = vrot.slane %v1864, %v1873
    %v1876 = vadd.f32 %v1869, %v1874
    %v1877 = vadd.f32 %v1049, %v1876
    %v1878 = vmax.f32 %v1877, 0.0
    %v1879 = vld [vmem:[%s7] sm:$0xff]
    %v1880 = vld [vmem:[%s7 + $0x8] sm:$0xff]
    %v1881 = vld [vmem:[%s7 + $0x10] sm:$0xff]
    %v1882 = vld [vmem:[%s7 + $0x18] sm:$0xff]
    %v1883 = vld [vmem:[%s7 + $0x20] sm:$0xff]
    %v1884 = vld [vmem:[%s7 + $0x28] sm:$0xff]
    %v1885 = vld [vmem:[%s7 + $0x30] sm:$0xff]
    %v1886 = vld [vmem:[%s7 + $0x38] sm:$0xff]
    %v1887 = vld [vmem:[%s7 + $0x40] sm:$0xff]
    %v1888 = vld [vmem:[%s7 + $0x48] sm:$0xff]
    %v1889 = vld [vmem:[%s7 + $0x50] sm:$0xff]
    %v1890 = vld [vmem:[%s7 + $0x58] sm:$0xff]
    %v1891 = vld [vmem:[%s7 + $0x60] sm:$0xff]
    %v1892 = vld [vmem:[%s7 + $0x68] sm:$0xff]
    %v1893 = vld [vmem:[%s7 + $0x70] sm:$0xff]
    %v1894 = vld [vmem:[%s7 + $0x78] sm:$0xff]
    %v1895 = vld [vmem:[#allocation8] sm:$0x1]
    %v1897 = vlaneseq
    %v1898 = vshrl.u32 %v1897, 7
    %v1899 = vsub.s32 0, %v1898
    %v1900 = vrot.slane %v1895, %v1899
    %1902 = vmatprep.subr.mxu0 0.0
    %1903 = vmatpush1.msra.mxu0 %v1894
    %1904 = vmatprep.subr.mxu0 0.0
    %1905 = vmatpush1.msra.mxu0 %v1893
    %1906 = vmatprep.subr.mxu0 0.0
    %1907 = vmatpush1.msra.mxu0 %v1892
    %1908 = vmatprep.subr.mxu0 0.0
    %1909 = vmatpush1.msra.mxu0 %v1891
    %1910 = vmatprep.subr.mxu0 0.0
    %1911 = vmatpush1.msra.mxu0 %v1890
    %1912 = vmatprep.subr.mxu0 0.0
    %1913 = vmatpush1.msra.mxu0 %v1889
    %1914 = vmatprep.subr.mxu0 0.0
    %1915 = vmatpush1.msra.mxu0 %v1888
    %1916 = vmatprep.subr.mxu0 0.0
    %1917 = vmatpush1.msra.mxu0 %v1887
    %1918 = vmatprep.subr.mxu0 0.0
    %1919 = vmatpush1.msra.mxu0 %v1886
    %1920 = vmatprep.subr.mxu0 0.0
    %1921 = vmatpush1.msra.mxu0 %v1885
    %1922 = vmatprep.subr.mxu0 0.0
    %1923 = vmatpush1.msra.mxu0 %v1884
    %1924 = vmatprep.subr.mxu0 0.0
    %1925 = vmatpush1.msra.mxu0 %v1883
    %1926 = vmatprep.subr.mxu0 0.0
    %1927 = vmatpush1.msra.mxu0 %v1882
    %1928 = vmatprep.subr.mxu0 0.0
    %1929 = vmatpush1.msra.mxu0 %v1881
    %1930 = vmatprep.subr.mxu0 0.0
    %1931 = vmatpush1.msra.mxu0 %v1880
    %1932 = vmatprep.subr.mxu0 0.0
    %1933 = vmatpush1.msra.mxu0 %v1879
    %1934 = vmatprep.subr.mxu0 0.0
    %1935 = vmatpush2.msra.mxu0 0.0
    %1936 = vmatprep.subr.mxu0 0.0
    %1937 = vmatpush2.msra.mxu0 0.0
    %1938 = vmatprep.subr.mxu0 0.0
    %1939 = vmatpush2.msra.mxu0 0.0
    %1940 = vmatprep.subr.mxu0 0.0
    %1941 = vmatpush2.msra.mxu0 0.0
    %1942 = vmatprep.subr.mxu0 0.0
    %1943 = vmatpush2.msra.mxu0 0.0
    %1944 = vmatprep.subr.mxu0 0.0
    %1945 = vmatpush2.msra.mxu0 0.0
    %1946 = vmatprep.subr.mxu0 0.0
    %1947 = vmatpush2.msra.mxu0 0.0
    %1948 = vmatprep.subr.mxu0 0.0
    %1949 = vmatpush2.msra.mxu0 0.0
    %1950 = vmatprep.subr.mxu0 0.0
    %1951 = vmatpush2.msra.mxu0 0.0
    %1952 = vmatprep.subr.mxu0 0.0
    %1953 = vmatpush2.msra.mxu0 0.0
    %1954 = vmatprep.subr.mxu0 0.0
    %1955 = vmatpush2.msra.mxu0 0.0
    %1956 = vmatprep.subr.mxu0 0.0
    %1957 = vmatpush2.msra.mxu0 0.0
    %1958 = vmatprep.subr.mxu0 0.0
    %1959 = vmatpush2.msra.mxu0 0.0
    %1960 = vmatprep.subr.mxu0 0.0
    %1961 = vmatpush2.msra.mxu0 0.0
    %1962 = vmatprep.subr.mxu0 0.0
    %1963 = vmatpush2.msra.mxu0 0.0
    %1964 = vmatprep.subr.mxu0 0.0
    %1965 = vmatpush2.msra.mxu0 0.0
    %1966 = vmatprep.mubr.f32.mxu0 0.0
    %1967 = vmatmul.mubr.f32.gmra.mxu0 %v1878
    %v1968 = vpop.f32.mrf.mxu0
    %v1969 = vadd.f32 %v1900, %v1968
    %v1970 = vpop.f32.mrf.mxu0
    %1971 = vdwg.mxu0
    %v1972 = vmax.f32 %v1969, 0.0
    %v1973 = vld [vmem:[%s9] sm:$0xff]
    %v1974 = vld [vmem:[%s9 + $0x8] sm:$0xff]
    %v1975 = vld [vmem:[%s9 + $0x10] sm:$0xff]
    %v1976 = vld [vmem:[%s9 + $0x18] sm:$0xff]
    %v1977 = vld [vmem:[%s9 + $0x20] sm:$0xff]
    %v1978 = vld [vmem:[%s9 + $0x28] sm:$0xff]
    %v1979 = vld [vmem:[%s9 + $0x30] sm:$0xff]
    %v1980 = vld [vmem:[%s9 + $0x38] sm:$0xff]
    %v1981 = vld [vmem:[#allocation10] sm:$0x1]
    %v1983 = vlaneseq
    %v1984 = vshrl.u32 %v1983, 7
    %v1985 = vsub.s32 0, %v1984
    %v1986 = vrot.slane %v1981, %v1985
    %v1989 = vsel %vm147, %v1972, 0
    %1991 = vmatprep.subr.mxu0 0.0
    %1992 = vmatpush1.msra.mxu0 0.0
    %1993 = vmatprep.subr.mxu0 0.0
    %1994 = vmatpush1.msra.mxu0 0.0
    %1995 = vmatprep.subr.mxu0 0.0
    %1996 = vmatpush1.msra.mxu0 0.0
    %1997 = vmatprep.subr.mxu0 0.0
    %1998 = vmatpush1.msra.mxu0 0.0
    %1999 = vmatprep.subr.mxu0 0.0
    %2000 = vmatpush1.msra.mxu0 0.0
    %2001 = vmatprep.subr.mxu0 0.0
    %2002 = vmatpush1.msra.mxu0 0.0
    %2003 = vmatprep.subr.mxu0 0.0
    %2004 = vmatpush1.msra.mxu0 0.0
    %2005 = vmatprep.subr.mxu0 0.0
    %2006 = vmatpush1.msra.mxu0 0.0
    %2007 = vmatprep.subr.mxu0 0.0
    %2008 = vmatpush1.msra.mxu0 %v1980
    %2009 = vmatprep.subr.mxu0 0.0
    %2010 = vmatpush1.msra.mxu0 %v1979
    %2011 = vmatprep.subr.mxu0 0.0
    %2012 = vmatpush1.msra.mxu0 %v1978
    %2013 = vmatprep.subr.mxu0 0.0
    %2014 = vmatpush1.msra.mxu0 %v1977
    %2015 = vmatprep.subr.mxu0 0.0
    %2016 = vmatpush1.msra.mxu0 %v1976
    %2017 = vmatprep.subr.mxu0 0.0
    %2018 = vmatpush1.msra.mxu0 %v1975
    %2019 = vmatprep.subr.mxu0 0.0
    %2020 = vmatpush1.msra.mxu0 %v1974
    %2021 = vmatprep.subr.mxu0 0.0
    %2022 = vmatpush1.msra.mxu0 %v1973
    %2023 = vmatprep.subr.mxu0 0.0
    %2024 = vmatpush2.msra.mxu0 0.0
    %2025 = vmatprep.subr.mxu0 0.0
    %2026 = vmatpush2.msra.mxu0 0.0
    %2027 = vmatprep.subr.mxu0 0.0
    %2028 = vmatpush2.msra.mxu0 0.0
    %2029 = vmatprep.subr.mxu0 0.0
    %2030 = vmatpush2.msra.mxu0 0.0
    %2031 = vmatprep.subr.mxu0 0.0
    %2032 = vmatpush2.msra.mxu0 0.0
    %2033 = vmatprep.subr.mxu0 0.0
    %2034 = vmatpush2.msra.mxu0 0.0
    %2035 = vmatprep.subr.mxu0 0.0
    %2036 = vmatpush2.msra.mxu0 0.0
    %2037 = vmatprep.subr.mxu0 0.0
    %2038 = vmatpush2.msra.mxu0 0.0
    %2039 = vmatprep.subr.mxu0 0.0
    %2040 = vmatpush2.msra.mxu0 0.0
    %2041 = vmatprep.subr.mxu0 0.0
    %2042 = vmatpush2.msra.mxu0 0.0
    %2043 = vmatprep.subr.mxu0 0.0
    %2044 = vmatpush2.msra.mxu0 0.0
    %2045 = vmatprep.subr.mxu0 0.0
    %2046 = vmatpush2.msra.mxu0 0.0
    %2047 = vmatprep.subr.mxu0 0.0
    %2048 = vmatpush2.msra.mxu0 0.0
    %2049 = vmatprep.subr.mxu0 0.0
    %2050 = vmatpush2.msra.mxu0 0.0
    %2051 = vmatprep.subr.mxu0 0.0
    %2052 = vmatpush2.msra.mxu0 0.0
    %2053 = vmatprep.subr.mxu0 0.0
    %2054 = vmatpush2.msra.mxu0 0.0
    %2055 = vmatprep.mubr.f32.mxu0 0.0
    %2056 = vmatmul.mubr.f32.gmra.mxu0 %v1989
    %v2057 = vpop.f32.mrf.mxu0
    %v2058 = vadd.f32 %v1986, %v2057
    %v2059 = vpop.f32.mrf.mxu0
    %2060 = vdwg.mxu0
    %v2061 = vmax.f32 %v2058, 0.0
    %v2062 = vld [vmem:[%s11] sm:$0xff]
    %v2063 = vld [vmem:[%s11 + $0x8] sm:$0xff]
    %v2064 = vld [vmem:[%s11 + $0x10] sm:$0xff]
    %v2065 = vld [vmem:[%s11 + $0x18] sm:$0xff]
    %v2066 = vld [vmem:[#allocation11] sm:$0x1]
    %v2068 = vlaneseq
    %v2069 = vshrl.u32 %v2068, 7
    %v2070 = vsub.s32 0, %v2069
    %v2071 = vrot.slane %v2066, %v2070
    %vm2073 = vcmask 261120
    %v2075 = vsel %vm2073, %v2061, 0
    %2077 = vmatprep.subr.mxu0 0.0
    %2078 = vmatpush1.msra.mxu0 0.0
    %2079 = vmatprep.subr.mxu0 0.0
    %2080 = vmatpush1.msra.mxu0 0.0
    %2081 = vmatprep.subr.mxu0 0.0
    %2082 = vmatpush1.msra.mxu0 0.0
    %2083 = vmatprep.subr.mxu0 0.0
    %2084 = vmatpush1.msra.mxu0 0.0
    %2085 = vmatprep.subr.mxu0 0.0
    %2086 = vmatpush1.msra.mxu0 0.0
    %2087 = vmatprep.subr.mxu0 0.0
    %2088 = vmatpush1.msra.mxu0 0.0
    %2089 = vmatprep.subr.mxu0 0.0
    %2090 = vmatpush1.msra.mxu0 0.0
    %2091 = vmatprep.subr.mxu0 0.0
    %2092 = vmatpush1.msra.mxu0 0.0
    %2093 = vmatprep.subr.mxu0 0.0
    %2094 = vmatpush1.msra.mxu0 0.0
    %2095 = vmatprep.subr.mxu0 0.0
    %2096 = vmatpush1.msra.mxu0 0.0
    %2097 = vmatprep.subr.mxu0 0.0
    %2098 = vmatpush1.msra.mxu0 0.0
    %2099 = vmatprep.subr.mxu0 0.0
    %2100 = vmatpush1.msra.mxu0 0.0
    %2101 = vmatprep.subr.mxu0 0.0
    %2102 = vmatpush1.msra.mxu0 %v2065
    %2103 = vmatprep.subr.mxu0 0.0
    %2104 = vmatpush1.msra.mxu0 %v2064
    %2105 = vmatprep.subr.mxu0 0.0
    %2106 = vmatpush1.msra.mxu0 %v2063
    %2107 = vmatprep.subr.mxu0 0.0
    %2108 = vmatpush1.msra.mxu0 %v2062
    %2109 = vmatprep.subr.mxu0 0.0
    %2110 = vmatpush2.msra.mxu0 0.0
    %2111 = vmatprep.subr.mxu0 0.0
    %2112 = vmatpush2.msra.mxu0 0.0
    %2113 = vmatprep.subr.mxu0 0.0
    %2114 = vmatpush2.msra.mxu0 0.0
    %2115 = vmatprep.subr.mxu0 0.0
    %2116 = vmatpush2.msra.mxu0 0.0
    %2117 = vmatprep.subr.mxu0 0.0
    %2118 = vmatpush2.msra.mxu0 0.0
    %2119 = vmatprep.subr.mxu0 0.0
    %2120 = vmatpush2.msra.mxu0 0.0
    %2121 = vmatprep.subr.mxu0 0.0
    %2122 = vmatpush2.msra.mxu0 0.0
    %2123 = vmatprep.subr.mxu0 0.0
    %2124 = vmatpush2.msra.mxu0 0.0
    %2125 = vmatprep.subr.mxu0 0.0
    %2126 = vmatpush2.msra.mxu0 0.0
    %2127 = vmatprep.subr.mxu0 0.0
    %2128 = vmatpush2.msra.mxu0 0.0
    %2129 = vmatprep.subr.mxu0 0.0
    %2130 = vmatpush2.msra.mxu0 0.0
    %2131 = vmatprep.subr.mxu0 0.0
    %2132 = vmatpush2.msra.mxu0 0.0
    %2133 = vmatprep.subr.mxu0 0.0
    %2134 = vmatpush2.msra.mxu0 0.0
    %2135 = vmatprep.subr.mxu0 0.0
    %2136 = vmatpush2.msra.mxu0 0.0
    %2137 = vmatprep.subr.mxu0 0.0
    %2138 = vmatpush2.msra.mxu0 0.0
    %2139 = vmatprep.subr.mxu0 0.0
    %2140 = vmatpush2.msra.mxu0 0.0
    %2141 = vmatprep.mubr.f32.mxu0 0.0
    %2142 = vmatmul.mubr.f32.gmra.mxu0 %v2075
    %v2143 = vpop.f32.mrf.mxu0
    %v2144 = vadd.f32 %v2071, %v2143
    %v2145 = vpop.f32.mrf.mxu0
    %2146 = vdwg.mxu0
    %vm2147 = vcmask 74752
    %v2148 = vsel %vm2147, %v2144, -inf
    %2149 = vmax.xlane.f32.xlu0 %v2148
    %v2150 = vpop.xlane.xlu0 %2149
    %v2151 = vsub.f32 %v2144, %v2150
    %v2152 = vmul.f32 %v2151, 1.442695
    %v2153 = vpow.pop %v2152
    %v2154 = vsel %vm2147, %v2153, 0.0
    %2155 = vadd.xlane.f32.xlu0 %v2154
    %v2156 = vpop.xlane.xlu0 %2155
    %v2157 = vrcp.pop %v2156
    %v2158 = vmul.f32 %v2153, %v2157
    %2159 = vst.msk [vmem:[#allocation13] sm:$0x3] %vm2147, %v2158
    // Predicated region
    $region78: #{network_forward.1} parent=1 // pred_check
      _
    $region79: #{network_forward.1} parent=1 // pred_check_branch
      %2161 = sbr.rel (0) target = $region81
    $region80: #{network_forward.1} parent=1 // pred_region
      %s2163 = ssub.s32 32, 32
      %2164 = vsyncadd [#allocation4], %s2163
      %s2166 = sshll.u32 [#allocation13], 4
      %s2167 = int_to_ptr.vmem [resolvable:$true] %s2166
      %2169 = dma.vmem_to_hbm [thread:$0]  %s2167, 32, %s13, [#allocation4]
    $region81: #{network_forward.1} parent=1 // pred_fallthru
      _
    // Predicated region
    $region82: #{network_forward.1} parent=1 // pred_check
      _
    $region83: #{network_forward.1} parent=1 // pred_check_branch
      %2171 = sbr.rel (0) target = $region85
    $region84: #{network_forward.1} parent=1 // pred_region
      %2172 = dma.done [#allocation4], 32
    $region85: #{network_forward.1} parent=1 // pred_fallthru
      _
    %2173 = vsyncpa [#allocation3], 1
    %2174 = vsyncpa [#allocation6], 1
    %2175 = vsyncpa [#allocation9], 1
    %2176 = vsyncpa [#allocation12], 1
    %2177 = vsyncpa [#allocation4], 1

</llo_original>
